<compile_context>
chip_gen: v6e
topology: v6e:2x2x1
jax: 0.10.0
libtpu: 0.0.40
codegen_flags: <defaults>
</compile_context>

<pallas_src>
from functools import partial

import jax
import jax.numpy as jnp
from jax.experimental import pallas as pl
from jax.experimental.pallas import tpu as pltpu

# ----------------------------- model hyper-params -----------------------------
B_ADAPT = 2      # adaptation (support) batch
B_INFER = 2      # inference (query) batch
C_IN = 1         # input image channels
H = 16           # image height
W = 16           # image width  (== decoded sequence length T)
T = W
KH = KW = 3
K = C_IN * KH * KW
D = 32           # conv feature channels / sequence feature dim
V = 16           # logical vocab size
VP = 128         # vocab padded to full lane width (lane-dense MXU + stores)
PAD_IDX = 0      # pad_tkn_idx -> ignore_index
INNER_LR = 1e-3  # inner_lr default of MAMLHTR
NEG_PAD = -1e9   # bias for padded vocab columns: never wins softmax / argmax


# ------------------ fused kernel: fast_adaptation + inference ------------------
def fused_kernel(ba, bi, patches_ref, adapt_tgt_ref, conv_w_ref, conv_b_ref,
                 head_w_ref, head_b_ref, logits_ref):
    f32, bf16 = jnp.float32, jnp.bfloat16
    nb = ba + bi

    # shared frozen conv encoder over support + query images: one bf16 MXU pass,
    # f32 accumulate, bias, ReLU.
    fa = jnp.maximum(
        jnp.dot(patches_ref[...], conv_w_ref[...], preferred_element_type=f32)
        + conv_b_ref[...], 0.0)                               # [(Ba+Bi)*H*W, D] f32

    # height mean: single major-axis reduction (pure VPU adds, no relayout)
    feats = (jnp.sum(fa.reshape(nb, H, W, D), axis=1) * (1.0 / H)
             ).reshape(nb * T, D)                             # [(Ba+Bi)*T, D] f32

    adapt_feats = feats[:ba * T, :]                           # [Ba*T, D]
    infer_feats = feats[ba * T:, :]                           # [Bi*T, D]

    head_w = head_w_ref[...]                                  # [D, VP] f32 (pad cols 0)
    head_b = head_b_ref[...]                                  # [1, VP] f32 (pad cols -1e9)

    # teacher-forcing support logits (bf16 operands, f32 accumulate + f32 bias)
    logits_s = jnp.dot(adapt_feats.astype(bf16), head_w.astype(bf16),
                       preferred_element_type=f32) + head_b   # [Ba*T, VP]

    # masked-mean cross-entropy gradient (ignore_index == PAD_IDX), all f32.
    # The loss value itself is never returned, so no log-sum-exp is needed.
    tgt = adapt_tgt_ref[...]                                  # [Ba*T, 1] int32
    iota = jax.lax.broadcasted_iota(jnp.int32, logits_s.shape, 1)
    onehot = (iota == tgt).astype(f32)
    mask = (tgt != PAD_IDX).astype(f32)                       # [Ba*T, 1]
    count = jnp.maximum(jnp.sum(mask), 1.0)                   # guard all-pad batch

    m = jnp.max(logits_s, axis=-1, keepdims=True)
    e = jnp.exp(logits_s - m)
    s = jnp.sum(e, axis=-1, keepdims=True)
    probs = e * pl.reciprocal(s, approx=True)                 # EUP vrcp

    # analytic gradient of support_loss wrt head params (pad columns stay 0).
    dlogits = (probs - onehot) * (mask * (1.0 / count))       # [Ba*T, VP]
    grad_w = jax.lax.dot_general(adapt_feats, dlogits, (((0,), (0,)), ((), ())),
                                 preferred_element_type=f32)  # [D, VP]
    grad_b = jnp.sum(dlogits, axis=0, keepdims=True)          # [1, VP]

    # learner.adapt(support_loss): single SGD step with inner_lr.
    # Adapted head never leaves the chip (no HBM round-trip).
    w_ad = head_w - INNER_LR * grad_w                         # [D, VP] f32
    b_ad = head_b - INNER_LR * grad_b                         # [1, VP] f32

    # inference with the adapted learner; lane-dense [Bi*T, VP] store.
    logits_q = jnp.dot(infer_feats.astype(bf16), w_ad.astype(bf16),
                       preferred_element_type=f32) + b_ad     # [Bi*T, VP] f32
    logits_ref[...] = logits_q


# --------------------------------- glue (JAX) ---------------------------------
def _im2col(x_nchw):
    """3x3 same-padding im2col -> bf16 [B*H*W, C*9], k index = c*9 + (kh*3+kw)."""
    B, C, Hh, Ww = x_nchw.shape
    xp = jnp.pad(x_nchw, ((0, 0), (0, 0), (1, 1), (1, 1)))
    cols = []
    for i in range(KH):
        for j in range(KW):
            cols.append(xp[:, :, i:i + Hh, j:j + Ww])          # [B,C,H,W]
    p = jnp.stack(cols, axis=2)                                # [B,C,9,H,W]
    p = jnp.transpose(p, (0, 3, 4, 1, 2)).reshape(B * Hh * Ww, C * KH * KW)
    return p.astype(jnp.bfloat16)


def init_params(key):
    k1, k2, k3 = jax.random.split(key, 3)
    # torch Conv2d weight layout [Cout, Cin, KH, KW]; Linear weight [V, D]
    conv_w = 0.1 * jax.random.normal(k1, (D, C_IN, KH, KW), jnp.float32)
    conv_b = jnp.zeros((1, D), jnp.float32)
    head_w = 0.1 * jax.random.normal(k2, (V, D), jnp.float32)
    head_b = 0.01 * jax.random.normal(k3, (1, V), jnp.float32)
    return {
        "conv_w2d": conv_w.reshape(D, K).T.astype(jnp.bfloat16),  # [K, D] bf16
        "conv_b": conv_b,                                         # [1, D] f32
        "head_w": head_w.T,                                       # [D, V] f32
        "head_b": head_b,                                         # [1, V] f32
    }


@jax.jit
def maml_htr_forward(params, adaptation_imgs, adaptation_targets, inference_imgs):
    Ba = adaptation_imgs.shape[0]
    Bi = inference_imgs.shape[0]

    # one stacked patch tensor -> one shared conv matmul in the kernel
    patches = _im2col(jnp.concatenate([adaptation_imgs, inference_imgs], axis=0))
    adapt_tgt = adaptation_targets.reshape(Ba * T, 1).astype(jnp.int32)

    # pad the head to a full 128-lane vocab: zero weights, -1e9 bias (never wins)
    head_w_p = jnp.pad(params["head_w"], ((0, 0), (0, VP - V)))
    head_b_p = jnp.pad(params["head_b"], ((0, 0), (0, VP - V)),
                       constant_values=NEG_PAD)

    vmem = pl.BlockSpec(memory_space=pltpu.MemorySpace.VMEM)

    logits_full = pl.pallas_call(
        partial(fused_kernel, Ba, Bi),
        out_shape=jax.ShapeDtypeStruct((Bi * T, VP), jnp.float32),
        in_specs=[vmem] * 6,
        out_specs=vmem,
        compiler_params=pltpu.CompilerParams(
            allow_input_fusion=[True, False, False, False, False, False]),
    )(patches, adapt_tgt, params["conv_w2d"], params["conv_b"],
      head_w_p, head_b_p)

    # strip vocab padding; greedy argmax fuses with the slice in XLA.
    logits = logits_full.reshape(Bi, T, VP)[:, :, :V]
    sampled_ids = jnp.argmax(logits, axis=-1).astype(jnp.int32)
    return logits, sampled_ids


# ------------------------------------ main -------------------------------------
if __name__ == "__main__":
    key = jax.random.PRNGKey(0)
    k_par, k_ai, k_at, k_ii = jax.random.split(key, 4)

    params = init_params(k_par)

    adaptation_imgs = jax.random.normal(k_ai, (B_ADAPT, C_IN, H, W), jnp.float32)
    # targets in [0, V); PAD_IDX (=0) tokens are naturally present and ignored
    adaptation_targets = jax.random.randint(k_at, (B_ADAPT, T), 0, V, jnp.int32)
    inference_imgs = jax.random.normal(k_ii, (B_INFER, C_IN, H, W), jnp.float32)

    logits, sampled_ids = maml_htr_forward(
        params, adaptation_imgs, adaptation_targets, inference_imgs)
    jax.block_until_ready((logits, sampled_ids))

    assert logits.shape == (B_INFER, T, V) and logits.dtype == jnp.float32
    assert sampled_ids.shape == (B_INFER, T) and sampled_ids.dtype == jnp.int32
    assert bool(jnp.all(sampled_ids >= 0)) and bool(jnp.all(sampled_ids < V))
    print("KERNEL_OK")
</pallas_src>

<mosaic_0001>
module attributes {stable_mosaic.version = 11 : i64} {
  func.func @fused_kernel(%arg0: memref<1024x9xbf16, #tpu.memory_space<vmem>>, %arg1: memref<32x1xi32, #tpu.memory_space<vmem>>, %arg2: memref<9x32xbf16, #tpu.memory_space<vmem>>, %arg3: memref<1x32xf32, #tpu.memory_space<vmem>>, %arg4: memref<32x128xf32, #tpu.memory_space<vmem>>, %arg5: memref<1x128xf32, #tpu.memory_space<vmem>>, %arg6: memref<32x128xf32, #tpu.memory_space<vmem>>) attributes {dimension_semantics = [], scalar_prefetch = 0 : i64, scratch_operands = 0 : i64, tpu.core_type = #tpu.core_type<tc>} {
    %c0 = arith.constant 0 : index
    %c0_0 = arith.constant 0 : index
    %0 = vector.load %arg0[%c0, %c0_0] : memref<1024x9xbf16, #tpu.memory_space<vmem>>, vector<1024x9xbf16>
    %c0_1 = arith.constant 0 : index
    %c0_2 = arith.constant 0 : index
    %1 = vector.load %arg2[%c0_1, %c0_2] : memref<9x32xbf16, #tpu.memory_space<vmem>>, vector<9x32xbf16>
    %cst = arith.constant dense<0.000000e+00> : vector<1024x32xf32>
    %2 = tpu.matmul %0, %1, %cst {dimension_numbers = #tpu.dot_dimension_numbers<[1], [0], [0], [1], [0, 0, 1, 1], [], []>} : vector<1024x9xbf16>, vector<9x32xbf16>, vector<1024x32xf32> -> vector<1024x32xf32>
    %c0_3 = arith.constant 0 : index
    %c0_4 = arith.constant 0 : index
    %3 = vector.load %arg3[%c0_3, %c0_4] : memref<1x32xf32, #tpu.memory_space<vmem>>, vector<1x32xf32>
    %4 = vector.broadcast %3 : vector<1x32xf32> to vector<1024x32xf32>
    %5 = arith.addf %2, %4 : vector<1024x32xf32>
    %cst_5 = arith.constant 0.000000e+00 : f32
    %6 = vector.broadcast %cst_5 : f32 to vector<1024x32xf32>
    %7 = arith.maximumf %5, %6 : vector<1024x32xf32>
    %8 = vector.shape_cast %7 : vector<1024x32xf32> to vector<4x16x16x32xf32>
    %cst_6 = arith.constant dense<0.000000e+00> : vector<4x16x32xf32>
    %9 = vector.multi_reduction <add>, %8, %cst_6 [1] : vector<4x16x16x32xf32> to vector<4x16x32xf32>
    %cst_7 = arith.constant 6.250000e-02 : f32
    %10 = vector.broadcast %cst_7 : f32 to vector<4x16x32xf32>
    %11 = arith.mulf %9, %10 : vector<4x16x32xf32>
    %12 = vector.shape_cast %11 : vector<4x16x32xf32> to vector<64x32xf32>
    %13 = vector.extract_strided_slice %12 {offsets = [0, 0], sizes = [32, 32], strides = [1, 1]} : vector<64x32xf32> to vector<32x32xf32>
    %14 = vector.extract_strided_slice %12 {offsets = [32, 0], sizes = [32, 32], strides = [1, 1]} : vector<64x32xf32> to vector<32x32xf32>
    %c0_8 = arith.constant 0 : index
    %c0_9 = arith.constant 0 : index
    %15 = vector.load %arg4[%c0_8, %c0_9] : memref<32x128xf32, #tpu.memory_space<vmem>>, vector<32x128xf32>
    %c0_10 = arith.constant 0 : index
    %c0_11 = arith.constant 0 : index
    %16 = vector.load %arg5[%c0_10, %c0_11] : memref<1x128xf32, #tpu.memory_space<vmem>>, vector<1x128xf32>
    %17 = arith.truncf %13 : vector<32x32xf32> to vector<32x32xbf16>
    %18 = arith.truncf %15 : vector<32x128xf32> to vector<32x128xbf16>
    %cst_12 = arith.constant dense<0.000000e+00> : vector<32x128xf32>
    %19 = tpu.matmul %17, %18, %cst_12 {dimension_numbers = #tpu.dot_dimension_numbers<[1], [0], [0], [1], [0, 0, 1, 1], [], []>} : vector<32x32xbf16>, vector<32x128xbf16>, vector<32x128xf32> -> vector<32x128xf32>
    %20 = vector.broadcast %16 : vector<1x128xf32> to vector<32x128xf32>
    %21 = arith.addf %19, %20 : vector<32x128xf32>
    %c0_13 = arith.constant 0 : index
    %c0_14 = arith.constant 0 : index
    %22 = vector.load %arg1[%c0_13, %c0_14] : memref<32x1xi32, #tpu.memory_space<vmem>>, vector<32x1xi32>
    %23 = tpu.iota {dimensions = array<i32: 1>} : vector<32x128xi32>
    %24 = vector.broadcast %22 : vector<32x1xi32> to vector<32x128xi32>
    %25 = arith.cmpi eq, %23, %24 : vector<32x128xi32>
    %26 = arith.extui %25 : vector<32x128xi1> to vector<32x128xi32>
    %27 = arith.sitofp %26 : vector<32x128xi32> to vector<32x128xf32>
    %c0_i32 = arith.constant 0 : i32
    %28 = vector.broadcast %c0_i32 : i32 to vector<32x1xi32>
    %29 = arith.cmpi ne, %22, %28 : vector<32x1xi32>
    %30 = arith.extui %29 : vector<32x1xi1> to vector<32x1xi32>
    %31 = arith.sitofp %30 : vector<32x1xi32> to vector<32x1xf32>
    %32 = vector.shape_cast %31 : vector<32x1xf32> to vector<1x32x1xf32>
    %cst_15 = arith.constant dense<0.000000e+00> : vector<1xf32>
    %33 = vector.multi_reduction <add>, %32, %cst_15 [1, 2] : vector<1x32x1xf32> to vector<1xf32>
    %34 = vector.shape_cast %33 : vector<1xf32> to vector<1x1x1xf32>
    %35 = vector.extract %34[0, 0, 0] : f32 from vector<1x1x1xf32>
    %cst_16 = arith.constant 1.000000e+00 : f32
    %36 = arith.maximumf %35, %cst_16 : f32
    %cst_17 = arith.constant dense<0xFF800000> : vector<32xf32>
    %37 = vector.multi_reduction <maximumf>, %21, %cst_17 [1] : vector<32x128xf32> to vector<32xf32>
    %38 = vector.shape_cast %37 : vector<32xf32> to vector<32x1xf32>
    %39 = vector.broadcast %38 : vector<32x1xf32> to vector<32x128xf32>
    %40 = arith.subf %21, %39 : vector<32x128xf32>
    %41 = math.exp %40 : vector<32x128xf32>
    %cst_18 = arith.constant dense<0.000000e+00> : vector<32xf32>
    %42 = vector.multi_reduction <add>, %41, %cst_18 [1] : vector<32x128xf32> to vector<32xf32>
    %43 = vector.shape_cast %42 : vector<32xf32> to vector<32x1xf32>
    %44 = tpu.reciprocal %43 {approx = true} : vector<32x1xf32> -> vector<32x1xf32>
    %45 = vector.broadcast %44 : vector<32x1xf32> to vector<32x128xf32>
    %46 = arith.mulf %41, %45 : vector<32x128xf32>
    %47 = arith.subf %46, %27 : vector<32x128xf32>
    %cst_19 = arith.constant 1.000000e+00 : f32
    %48 = arith.divf %cst_19, %36 : f32
    %49 = vector.broadcast %48 : f32 to vector<32x1xf32>
    %50 = arith.mulf %31, %49 : vector<32x1xf32>
    %51 = vector.broadcast %50 : vector<32x1xf32> to vector<32x128xf32>
    %52 = arith.mulf %47, %51 : vector<32x128xf32>
    %cst_20 = arith.constant dense<0.000000e+00> : vector<32x128xf32>
    %53 = tpu.matmul %13, %52, %cst_20 {dimension_numbers = #tpu.dot_dimension_numbers<[0], [0], [1], [1], [0, 1, 1, 1], [], []>} : vector<32x32xf32>, vector<32x128xf32>, vector<32x128xf32> -> vector<32x128xf32>
    %cst_21 = arith.constant dense<0.000000e+00> : vector<128xf32>
    %54 = vector.multi_reduction <add>, %52, %cst_21 [0] : vector<32x128xf32> to vector<128xf32>
    %55 = vector.shape_cast %54 : vector<128xf32> to vector<1x128xf32>
    %cst_22 = arith.constant 1.000000e-03 : f32
    %56 = vector.broadcast %cst_22 : f32 to vector<32x128xf32>
    %57 = arith.mulf %56, %53 : vector<32x128xf32>
    %58 = arith.subf %15, %57 : vector<32x128xf32>
    %cst_23 = arith.constant 1.000000e-03 : f32
    %59 = vector.broadcast %cst_23 : f32 to vector<1x128xf32>
    %60 = arith.mulf %59, %55 : vector<1x128xf32>
    %61 = arith.subf %16, %60 : vector<1x128xf32>
    %62 = arith.truncf %14 : vector<32x32xf32> to vector<32x32xbf16>
    %63 = arith.truncf %58 : vector<32x128xf32> to vector<32x128xbf16>
    %cst_24 = arith.constant dense<0.000000e+00> : vector<32x128xf32>
    %64 = tpu.matmul %62, %63, %cst_24 {dimension_numbers = #tpu.dot_dimension_numbers<[1], [0], [0], [1], [0, 0, 1, 1], [], []>} : vector<32x32xbf16>, vector<32x128xbf16>, vector<32x128xf32> -> vector<32x128xf32>
    %65 = vector.broadcast %61 : vector<1x128xf32> to vector<32x128xf32>
    %66 = arith.addf %64, %65 : vector<32x128xf32>
    %c0_25 = arith.constant 0 : index
    %c0_26 = arith.constant 0 : index
    %67 = vector.load %arg6[%c0_25, %c0_26] : memref<32x128xf32, #tpu.memory_space<vmem>>, vector<32x128xf32>
    tpu.vector_store %arg6[%c0_25, %c0_26], %66 {strides = array<i32>} : memref<32x128xf32, #tpu.memory_space<vmem>>, vector<32x128xf32>,
    return
  }
}

</mosaic_0001>

<llo_original>
// kernel: maml_htr_forward.1
$region0: #{maml_htr_forward.1}
  #allocation0 [shape = 'u32[]', space=smem, size = 0x4, offset = 0x4, fixed_abs, tag = 'smem constant byte address 0x4 - core index']
  #allocation1 [shape = 'u32[144,128]{1,0:T(1,128)}', space=vmem, size = 0x12000, scoped, tag = 'internal scratch']
  %s0 = inlined_call_operand.vmem [shape: bf16[1024,9], index: 0, kind: input, shape index: {}]
  %s1 = inlined_call_operand.vmem [shape: s32[32,1], index: 1, kind: input, shape index: {}]
  %s2 = inlined_call_operand.vmem [shape: bf16[9,32], index: 2, kind: input, shape index: {}]
  %s3 = inlined_call_operand.vmem [shape: f32[1,32], index: 3, kind: input, shape index: {}]
  %s4 = inlined_call_operand.vmem [shape: f32[32,128], index: 4, kind: input, shape index: {}]
  %s5 = inlined_call_operand.vmem [shape: f32[1,128], index: 5, kind: input, shape index: {}]
  %s6 = inlined_call_operand.vmem [shape: f32[32,128], index: 6, kind: output, shape index: {}]
  %s7 = sld [smem:[#allocation0]]
  $region34: #{maml_htr_forward.1} parent=0
    _
  %s9 = ssub.s32 1, %s7
  %s10 = scalar_select 0, %s9, %s7
  // Predicated region
  $region2: #{maml_htr_forward.1} parent=0 // pred_check
    _
  $region3: #{maml_htr_forward.1} parent=0 // pred_check_branch
    %12 = sbr.rel (0) target = $region5
  $region4: #{maml_htr_forward.1} parent=0 // pred_region
    _
  $region5: #{maml_htr_forward.1} parent=0 // pred_fallthru
    _
  // Predicated region
  $region6: #{maml_htr_forward.1} parent=0 // pred_check
    _
  $region7: #{maml_htr_forward.1} parent=0 // pred_check_branch
    %14 = sbr.rel (0) target = $region9
  $region8: #{maml_htr_forward.1} parent=0 // pred_region
    _
  $region9: #{maml_htr_forward.1} parent=0 // pred_fallthru
    _
  // Predicated region
  $region10: #{maml_htr_forward.1} parent=0 // pred_check
    _
  $region11: #{maml_htr_forward.1} parent=0 // pred_check_branch
    %16 = sbr.rel (0) target = $region13
  $region12: #{maml_htr_forward.1} parent=0 // pred_region
    _
  $region13: #{maml_htr_forward.1} parent=0 // pred_fallthru
    _
  // Predicated region
  $region14: #{maml_htr_forward.1} parent=0 // pred_check
    _
  $region15: #{maml_htr_forward.1} parent=0 // pred_check_branch
    %18 = sbr.rel (0) target = $region17
  $region16: #{maml_htr_forward.1} parent=0 // pred_region
    _
  $region17: #{maml_htr_forward.1} parent=0 // pred_fallthru
    _
  // Predicated region
  $region18: #{maml_htr_forward.1} parent=0 // pred_check
    _
  $region19: #{maml_htr_forward.1} parent=0 // pred_check_branch
    %20 = sbr.rel (0) target = $region21
  $region20: #{maml_htr_forward.1} parent=0 // pred_region
    _
  $region21: #{maml_htr_forward.1} parent=0 // pred_fallthru
    _
  // Predicated region
  $region22: #{maml_htr_forward.1} parent=0 // pred_check
    _
  $region23: #{maml_htr_forward.1} parent=0 // pred_check_branch
    %22 = sbr.rel (0) target = $region25
  $region24: #{maml_htr_forward.1} parent=0 // pred_region
    _
  $region25: #{maml_htr_forward.1} parent=0 // pred_fallthru
    _
  %v24 = vld [vmem:[%s0] sm:$0xf]
  %v25 = vld [vmem:[%s0 + $0x4] sm:$0xf]
  %v26 = vld [vmem:[%s0 + $0x8] sm:$0xf]
  %v27 = vld [vmem:[%s0 + $0xc] sm:$0xf]
  %v28 = vld [vmem:[%s0 + $0x10] sm:$0xf]
  %v29 = vld [vmem:[%s0 + $0x14] sm:$0xf]
  %v30 = vld [vmem:[%s0 + $0x18] sm:$0xf]
  %v31 = vld [vmem:[%s0 + $0x1c] sm:$0xf]
  %v32 = vld [vmem:[%s0 + $0x20] sm:$0xf]
  %v33 = vld [vmem:[%s0 + $0x24] sm:$0xf]
  %v34 = vld [vmem:[%s0 + $0x28] sm:$0xf]
  %v35 = vld [vmem:[%s0 + $0x2c] sm:$0xf]
  %v36 = vld [vmem:[%s0 + $0x30] sm:$0xf]
  %v37 = vld [vmem:[%s0 + $0x34] sm:$0xf]
  %v38 = vld [vmem:[%s0 + $0x38] sm:$0xf]
  %v39 = vld [vmem:[%s0 + $0x3c] sm:$0xf]
  %v40 = vld [vmem:[%s0 + $0x40] sm:$0xf]
  %v41 = vld [vmem:[%s0 + $0x44] sm:$0xf]
  %v42 = vld [vmem:[%s0 + $0x48] sm:$0xf]
  %v43 = vld [vmem:[%s0 + $0x4c] sm:$0xf]
  %v44 = vld [vmem:[%s0 + $0x50] sm:$0xf]
  %v45 = vld [vmem:[%s0 + $0x54] sm:$0xf]
  %v46 = vld [vmem:[%s0 + $0x58] sm:$0xf]
  %v47 = vld [vmem:[%s0 + $0x5c] sm:$0xf]
  %v48 = vld [vmem:[%s0 + $0x60] sm:$0xf]
  %v49 = vld [vmem:[%s0 + $0x64] sm:$0xf]
  %v50 = vld [vmem:[%s0 + $0x68] sm:$0xf]
  %v51 = vld [vmem:[%s0 + $0x6c] sm:$0xf]
  %v52 = vld [vmem:[%s0 + $0x70] sm:$0xf]
  %v53 = vld [vmem:[%s0 + $0x74] sm:$0xf]
  %v54 = vld [vmem:[%s0 + $0x78] sm:$0xf]
  %v55 = vld [vmem:[%s0 + $0x7c] sm:$0xf]
  %v56 = vld [vmem:[%s0 + $0x80] sm:$0xf]
  %v57 = vld [vmem:[%s0 + $0x84] sm:$0xf]
  %v58 = vld [vmem:[%s0 + $0x88] sm:$0xf]
  %v59 = vld [vmem:[%s0 + $0x8c] sm:$0xf]
  %v60 = vld [vmem:[%s0 + $0x90] sm:$0xf]
  %v61 = vld [vmem:[%s0 + $0x94] sm:$0xf]
  %v62 = vld [vmem:[%s0 + $0x98] sm:$0xf]
  %v63 = vld [vmem:[%s0 + $0x9c] sm:$0xf]
  %v64 = vld [vmem:[%s0 + $0xa0] sm:$0xf]
  %v65 = vld [vmem:[%s0 + $0xa4] sm:$0xf]
  %v66 = vld [vmem:[%s0 + $0xa8] sm:$0xf]
  %v67 = vld [vmem:[%s0 + $0xac] sm:$0xf]
  %v68 = vld [vmem:[%s0 + $0xb0] sm:$0xf]
  %v69 = vld [vmem:[%s0 + $0xb4] sm:$0xf]
  %v70 = vld [vmem:[%s0 + $0xb8] sm:$0xf]
  %v71 = vld [vmem:[%s0 + $0xbc] sm:$0xf]
  %v72 = vld [vmem:[%s0 + $0xc0] sm:$0xf]
  %v73 = vld [vmem:[%s0 + $0xc4] sm:$0xf]
  %v74 = vld [vmem:[%s0 + $0xc8] sm:$0xf]
  %v75 = vld [vmem:[%s0 + $0xcc] sm:$0xf]
  %v76 = vld [vmem:[%s0 + $0xd0] sm:$0xf]
  %v77 = vld [vmem:[%s0 + $0xd4] sm:$0xf]
  %v78 = vld [vmem:[%s0 + $0xd8] sm:$0xf]
  %v79 = vld [vmem:[%s0 + $0xdc] sm:$0xf]
  %v80 = vld [vmem:[%s0 + $0xe0] sm:$0xf]
  %v81 = vld [vmem:[%s0 + $0xe4] sm:$0xf]
  %v82 = vld [vmem:[%s0 + $0xe8] sm:$0xf]
  %v83 = vld [vmem:[%s0 + $0xec] sm:$0xf]
  %v84 = vld [vmem:[%s0 + $0xf0] sm:$0xf]
  %v85 = vld [vmem:[%s0 + $0xf4] sm:$0xf]
  %v86 = vld [vmem:[%s0 + $0xf8] sm:$0xf]
  %v87 = vld [vmem:[%s0 + $0xfc] sm:$0xf]
  %v88 = vld [vmem:[%s0 + $0x100] sm:$0xf]
  %v89 = vld [vmem:[%s0 + $0x104] sm:$0xf]
  %v90 = vld [vmem:[%s0 + $0x108] sm:$0xf]
  %v91 = vld [vmem:[%s0 + $0x10c] sm:$0xf]
  %v92 = vld [vmem:[%s0 + $0x110] sm:$0xf]
  %v93 = vld [vmem:[%s0 + $0x114] sm:$0xf]
  %v94 = vld [vmem:[%s0 + $0x118] sm:$0xf]
  %v95 = vld [vmem:[%s0 + $0x11c] sm:$0xf]
  %v96 = vld [vmem:[%s0 + $0x120] sm:$0xf]
  %v97 = vld [vmem:[%s0 + $0x124] sm:$0xf]
  %v98 = vld [vmem:[%s0 + $0x128] sm:$0xf]
  %v99 = vld [vmem:[%s0 + $0x12c] sm:$0xf]
  %v100 = vld [vmem:[%s0 + $0x130] sm:$0xf]
  %v101 = vld [vmem:[%s0 + $0x134] sm:$0xf]
  %v102 = vld [vmem:[%s0 + $0x138] sm:$0xf]
  %v103 = vld [vmem:[%s0 + $0x13c] sm:$0xf]
  %v104 = vld [vmem:[%s0 + $0x140] sm:$0xf]
  %v105 = vld [vmem:[%s0 + $0x144] sm:$0xf]
  %v106 = vld [vmem:[%s0 + $0x148] sm:$0xf]
  %v107 = vld [vmem:[%s0 + $0x14c] sm:$0xf]
  %v108 = vld [vmem:[%s0 + $0x150] sm:$0xf]
  %v109 = vld [vmem:[%s0 + $0x154] sm:$0xf]
  %v110 = vld [vmem:[%s0 + $0x158] sm:$0xf]
  %v111 = vld [vmem:[%s0 + $0x15c] sm:$0xf]
  %v112 = vld [vmem:[%s0 + $0x160] sm:$0xf]
  %v113 = vld [vmem:[%s0 + $0x164] sm:$0xf]
  %v114 = vld [vmem:[%s0 + $0x168] sm:$0xf]
  %v115 = vld [vmem:[%s0 + $0x16c] sm:$0xf]
  %v116 = vld [vmem:[%s0 + $0x170] sm:$0xf]
  %v117 = vld [vmem:[%s0 + $0x174] sm:$0xf]
  %v118 = vld [vmem:[%s0 + $0x178] sm:$0xf]
  %v119 = vld [vmem:[%s0 + $0x17c] sm:$0xf]
  %v120 = vld [vmem:[%s0 + $0x180] sm:$0xf]
  %v121 = vld [vmem:[%s0 + $0x184] sm:$0xf]
  %v122 = vld [vmem:[%s0 + $0x188] sm:$0xf]
  %v123 = vld [vmem:[%s0 + $0x18c] sm:$0xf]
  %v124 = vld [vmem:[%s0 + $0x190] sm:$0xf]
  %v125 = vld [vmem:[%s0 + $0x194] sm:$0xf]
  %v126 = vld [vmem:[%s0 + $0x198] sm:$0xf]
  %v127 = vld [vmem:[%s0 + $0x19c] sm:$0xf]
  %v128 = vld [vmem:[%s0 + $0x1a0] sm:$0xf]
  %v129 = vld [vmem:[%s0 + $0x1a4] sm:$0xf]
  %v130 = vld [vmem:[%s0 + $0x1a8] sm:$0xf]
  %v131 = vld [vmem:[%s0 + $0x1ac] sm:$0xf]
  %v132 = vld [vmem:[%s0 + $0x1b0] sm:$0xf]
  %v133 = vld [vmem:[%s0 + $0x1b4] sm:$0xf]
  %v134 = vld [vmem:[%s0 + $0x1b8] sm:$0xf]
  %v135 = vld [vmem:[%s0 + $0x1bc] sm:$0xf]
  %v136 = vld [vmem:[%s0 + $0x1c0] sm:$0xf]
  %v137 = vld [vmem:[%s0 + $0x1c4] sm:$0xf]
  %v138 = vld [vmem:[%s0 + $0x1c8] sm:$0xf]
  %v139 = vld [vmem:[%s0 + $0x1cc] sm:$0xf]
  %v140 = vld [vmem:[%s0 + $0x1d0] sm:$0xf]
  %v141 = vld [vmem:[%s0 + $0x1d4] sm:$0xf]
  %v142 = vld [vmem:[%s0 + $0x1d8] sm:$0xf]
  %v143 = vld [vmem:[%s0 + $0x1dc] sm:$0xf]
  %v144 = vld [vmem:[%s0 + $0x1e0] sm:$0xf]
  %v145 = vld [vmem:[%s0 + $0x1e4] sm:$0xf]
  %v146 = vld [vmem:[%s0 + $0x1e8] sm:$0xf]
  %v147 = vld [vmem:[%s0 + $0x1ec] sm:$0xf]
  %v148 = vld [vmem:[%s0 + $0x1f0] sm:$0xf]
  %v149 = vld [vmem:[%s0 + $0x1f4] sm:$0xf]
  %v150 = vld [vmem:[%s0 + $0x1f8] sm:$0xf]
  %v151 = vld [vmem:[%s0 + $0x1fc] sm:$0xf]
  %v152 = vld [vmem:[%s2] sm:$0xf]
  %v153 = vld [vmem:[%s2 + $0x4] sm:$0x1]
  %v154 = vld [vmem:[%s3] sm:$0x1]
  %v156 = vlaneseq
  %v157 = vshrl.u32 %v156, 7
  %v158 = vsub.s32 0, %v157
  %v159 = vrot.slane %v154, %v158
  %v289 = vunpack.c.l.b16 %v24
  %v290 = vunpack.c.l.b16 %v25
  %v291 = vunpack.c.l.b16 %v26
  %v292 = vunpack.c.l.b16 %v27
  %v293 = vunpack.c.l.b16 %v28
  %v294 = vunpack.c.l.b16 %v29
  %v295 = vunpack.c.l.b16 %v30
  %v296 = vunpack.c.l.b16 %v31
  %v297 = vunpack.c.l.b16 %v32
  %v298 = vunpack.c.l.b16 %v33
  %v299 = vunpack.c.l.b16 %v34
  %v300 = vunpack.c.l.b16 %v35
  %v301 = vunpack.c.l.b16 %v36
  %v302 = vunpack.c.l.b16 %v37
  %v303 = vunpack.c.l.b16 %v38
  %v304 = vunpack.c.l.b16 %v39
  %v305 = vunpack.c.l.b16 %v40
  %v306 = vunpack.c.l.b16 %v41
  %v307 = vunpack.c.l.b16 %v42
  %v308 = vunpack.c.l.b16 %v43
  %v309 = vunpack.c.l.b16 %v44
  %v310 = vunpack.c.l.b16 %v45
  %v311 = vunpack.c.l.b16 %v46
  %v312 = vunpack.c.l.b16 %v47
  %v313 = vunpack.c.l.b16 %v48
  %v314 = vunpack.c.l.b16 %v49
  %v315 = vunpack.c.l.b16 %v50
  %v316 = vunpack.c.l.b16 %v51
  %v317 = vunpack.c.l.b16 %v52
  %v318 = vunpack.c.l.b16 %v53
  %v319 = vunpack.c.l.b16 %v54
  %v320 = vunpack.c.l.b16 %v55
  %v321 = vunpack.c.l.b16 %v56
  %v322 = vunpack.c.l.b16 %v57
  %v323 = vunpack.c.l.b16 %v58
  %v324 = vunpack.c.l.b16 %v59
  %v325 = vunpack.c.l.b16 %v60
  %v326 = vunpack.c.l.b16 %v61
  %v327 = vunpack.c.l.b16 %v62
  %v328 = vunpack.c.l.b16 %v63
  %v329 = vunpack.c.l.b16 %v64
  %v330 = vunpack.c.l.b16 %v65
  %v331 = vunpack.c.l.b16 %v66
  %v332 = vunpack.c.l.b16 %v67
  %v333 = vunpack.c.l.b16 %v68
  %v334 = vunpack.c.l.b16 %v69
  %v335 = vunpack.c.l.b16 %v70
  %v336 = vunpack.c.l.b16 %v71
  %v337 = vunpack.c.l.b16 %v72
  %v338 = vunpack.c.l.b16 %v73
  %v339 = vunpack.c.l.b16 %v74
  %v340 = vunpack.c.l.b16 %v75
  %v341 = vunpack.c.l.b16 %v76
  %v342 = vunpack.c.l.b16 %v77
  %v343 = vunpack.c.l.b16 %v78
  %v344 = vunpack.c.l.b16 %v79
  %v345 = vunpack.c.l.b16 %v80
  %v346 = vunpack.c.l.b16 %v81
  %v347 = vunpack.c.l.b16 %v82
  %v348 = vunpack.c.l.b16 %v83
  %v349 = vunpack.c.l.b16 %v84
  %v350 = vunpack.c.l.b16 %v85
  %v351 = vunpack.c.l.b16 %v86
  %v352 = vunpack.c.l.b16 %v87
  %v353 = vunpack.c.l.b16 %v88
  %v354 = vunpack.c.l.b16 %v89
  %v355 = vunpack.c.l.b16 %v90
  %v356 = vunpack.c.l.b16 %v91
  %v357 = vunpack.c.l.b16 %v92
  %v358 = vunpack.c.l.b16 %v93
  %v359 = vunpack.c.l.b16 %v94
  %v360 = vunpack.c.l.b16 %v95
  %v361 = vunpack.c.l.b16 %v96
  %v362 = vunpack.c.l.b16 %v97
  %v363 = vunpack.c.l.b16 %v98
  %v364 = vunpack.c.l.b16 %v99
  %v365 = vunpack.c.l.b16 %v100
  %v366 = vunpack.c.l.b16 %v101
  %v367 = vunpack.c.l.b16 %v102
  %v368 = vunpack.c.l.b16 %v103
  %v369 = vunpack.c.l.b16 %v104
  %v370 = vunpack.c.l.b16 %v105
  %v371 = vunpack.c.l.b16 %v106
  %v372 = vunpack.c.l.b16 %v107
  %v373 = vunpack.c.l.b16 %v108
  %v374 = vunpack.c.l.b16 %v109
  %v375 = vunpack.c.l.b16 %v110
  %v376 = vunpack.c.l.b16 %v111
  %v377 = vunpack.c.l.b16 %v112
  %v378 = vunpack.c.l.b16 %v113
  %v379 = vunpack.c.l.b16 %v114
  %v380 = vunpack.c.l.b16 %v115
  %v381 = vunpack.c.l.b16 %v116
  %v382 = vunpack.c.l.b16 %v117
  %v383 = vunpack.c.l.b16 %v118
  %v384 = vunpack.c.l.b16 %v119
  %v385 = vunpack.c.l.b16 %v120
  %v386 = vunpack.c.l.b16 %v121
  %v387 = vunpack.c.l.b16 %v122
  %v388 = vunpack.c.l.b16 %v123
  %v389 = vunpack.c.l.b16 %v124
  %v390 = vunpack.c.l.b16 %v125
  %v391 = vunpack.c.l.b16 %v126
  %v392 = vunpack.c.l.b16 %v127
  %v393 = vunpack.c.l.b16 %v128
  %v394 = vunpack.c.l.b16 %v129
  %v395 = vunpack.c.l.b16 %v130
  %v396 = vunpack.c.l.b16 %v131
  %v397 = vunpack.c.l.b16 %v132
  %v398 = vunpack.c.l.b16 %v133
  %v399 = vunpack.c.l.b16 %v134
  %v400 = vunpack.c.l.b16 %v135
  %v401 = vunpack.c.l.b16 %v136
  %v402 = vunpack.c.l.b16 %v137
  %v403 = vunpack.c.l.b16 %v138
  %v404 = vunpack.c.l.b16 %v139
  %v405 = vunpack.c.l.b16 %v140
  %v406 = vunpack.c.l.b16 %v141
  %v407 = vunpack.c.l.b16 %v142
  %v408 = vunpack.c.l.b16 %v143
  %v409 = vunpack.c.l.b16 %v144
  %v410 = vunpack.c.l.b16 %v145
  %v411 = vunpack.c.l.b16 %v146
  %v412 = vunpack.c.l.b16 %v147
  %v413 = vunpack.c.l.b16 %v148
  %v414 = vunpack.c.l.b16 %v149
  %v415 = vunpack.c.l.b16 %v150
  %v416 = vunpack.c.l.b16 %v151
  %v417 = vpack.c.b16 %v290, %v289
  %v418 = vpack.c.b16 %v292, %v291
  %v419 = vpack.c.b16 %v294, %v293
  %v420 = vpack.c.b16 %v296, %v295
  %v421 = vpack.c.b16 %v298, %v297
  %v422 = vpack.c.b16 %v300, %v299
  %v423 = vpack.c.b16 %v302, %v301
  %v424 = vpack.c.b16 %v304, %v303
  %v425 = vpack.c.b16 %v306, %v305
  %v426 = vpack.c.b16 %v308, %v307
  %v427 = vpack.c.b16 %v310, %v309
  %v428 = vpack.c.b16 %v312, %v311
  %v429 = vpack.c.b16 %v314, %v313
  %v430 = vpack.c.b16 %v316, %v315
  %v431 = vpack.c.b16 %v318, %v317
  %v432 = vpack.c.b16 %v320, %v319
  %v433 = vpack.c.b16 %v322, %v321
  %v434 = vpack.c.b16 %v324, %v323
  %v435 = vpack.c.b16 %v326, %v325
  %v436 = vpack.c.b16 %v328, %v327
  %v437 = vpack.c.b16 %v330, %v329
  %v438 = vpack.c.b16 %v332, %v331
  %v439 = vpack.c.b16 %v334, %v333
  %v440 = vpack.c.b16 %v336, %v335
  %v441 = vpack.c.b16 %v338, %v337
  %v442 = vpack.c.b16 %v340, %v339
  %v443 = vpack.c.b16 %v342, %v341
  %v444 = vpack.c.b16 %v344, %v343
  %v445 = vpack.c.b16 %v346, %v345
  %v446 = vpack.c.b16 %v348, %v347
  %v447 = vpack.c.b16 %v350, %v349
  %v448 = vpack.c.b16 %v352, %v351
  %v449 = vpack.c.b16 %v354, %v353
  %v450 = vpack.c.b16 %v356, %v355
  %v451 = vpack.c.b16 %v358, %v357
  %v452 = vpack.c.b16 %v360, %v359
  %v453 = vpack.c.b16 %v362, %v361
  %v454 = vpack.c.b16 %v364, %v363
  %v455 = vpack.c.b16 %v366, %v365
  %v456 = vpack.c.b16 %v368, %v367
  %v457 = vpack.c.b16 %v370, %v369
  %v458 = vpack.c.b16 %v372, %v371
  %v459 = vpack.c.b16 %v374, %v373
  %v460 = vpack.c.b16 %v376, %v375
  %v461 = vpack.c.b16 %v378, %v377
  %v462 = vpack.c.b16 %v380, %v379
  %v463 = vpack.c.b16 %v382, %v381
  %v464 = vpack.c.b16 %v384, %v383
  %v465 = vpack.c.b16 %v386, %v385
  %v466 = vpack.c.b16 %v388, %v387
  %v467 = vpack.c.b16 %v390, %v389
  %v468 = vpack.c.b16 %v392, %v391
  %v469 = vpack.c.b16 %v394, %v393
  %v470 = vpack.c.b16 %v396, %v395
  %v471 = vpack.c.b16 %v398, %v397
  %v472 = vpack.c.b16 %v400, %v399
  %v473 = vpack.c.b16 %v402, %v401
  %v474 = vpack.c.b16 %v404, %v403
  %v475 = vpack.c.b16 %v406, %v405
  %v476 = vpack.c.b16 %v408, %v407
  %v477 = vpack.c.b16 %v410, %v409
  %v478 = vpack.c.b16 %v412, %v411
  %v479 = vpack.c.b16 %v414, %v413
  %v480 = vpack.c.b16 %v416, %v415
  %v483 = vunpack.c.l.b16 %v152
  %v484 = vunpack.c.l.b16 %v153
  %v485 = vpack.c.b16 %v484, %v483
  %vm486 = vcmask 72704
  %v488 = vsel %vm486, %v417, 0
  %v491 = vsel %vm486, %v418, 0
  %v494 = vsel %vm486, %v419, 0
  %v497 = vsel %vm486, %v420, 0
  %v500 = vsel %vm486, %v421, 0
  %v503 = vsel %vm486, %v422, 0
  %v506 = vsel %vm486, %v423, 0
  %v509 = vsel %vm486, %v424, 0
  %v512 = vsel %vm486, %v425, 0
  %v515 = vsel %vm486, %v426, 0
  %v518 = vsel %vm486, %v427, 0
  %v521 = vsel %vm486, %v428, 0
  %v524 = vsel %vm486, %v429, 0
  %v527 = vsel %vm486, %v430, 0
  %v530 = vsel %vm486, %v431, 0
  %v533 = vsel %vm486, %v432, 0
  %v536 = vsel %vm486, %v433, 0
  %v539 = vsel %vm486, %v434, 0
  %v542 = vsel %vm486, %v435, 0
  %v545 = vsel %vm486, %v436, 0
  %v548 = vsel %vm486, %v437, 0
  %v551 = vsel %vm486, %v438, 0
  %v554 = vsel %vm486, %v439, 0
  %v557 = vsel %vm486, %v440, 0
  %v560 = vsel %vm486, %v441, 0
  %v563 = vsel %vm486, %v442, 0
  %v566 = vsel %vm486, %v443, 0
  %v569 = vsel %vm486, %v444, 0
  %v572 = vsel %vm486, %v445, 0
  %v575 = vsel %vm486, %v446, 0
  %v578 = vsel %vm486, %v447, 0
  %v581 = vsel %vm486, %v448, 0
  %v584 = vsel %vm486, %v449, 0
  %v587 = vsel %vm486, %v450, 0
  %v590 = vsel %vm486, %v451, 0
  %v593 = vsel %vm486, %v452, 0
  %v596 = vsel %vm486, %v453, 0
  %v599 = vsel %vm486, %v454, 0
  %v602 = vsel %vm486, %v455, 0
  %v605 = vsel %vm486, %v456, 0
  %v608 = vsel %vm486, %v457, 0
  %v611 = vsel %vm486, %v458, 0
  %v614 = vsel %vm486, %v459, 0
  %v617 = vsel %vm486, %v460, 0
  %v620 = vsel %vm486, %v461, 0
  %v623 = vsel %vm486, %v462, 0
  %v626 = vsel %vm486, %v463, 0
  %v629 = vsel %vm486, %v464, 0
  %v632 = vsel %vm486, %v465, 0
  %v635 = vsel %vm486, %v466, 0
  %v638 = vsel %vm486, %v467, 0
  %v641 = vsel %vm486, %v468, 0
  %v644 = vsel %vm486, %v469, 0
  %v647 = vsel %vm486, %v470, 0
  %v650 = vsel %vm486, %v471, 0
  %v653 = vsel %vm486, %v472, 0
  %v656 = vsel %vm486, %v473, 0
  %v659 = vsel %vm486, %v474, 0
  %v662 = vsel %vm486, %v475, 0
  %v665 = vsel %vm486, %v476, 0
  %v668 = vsel %vm486, %v477, 0
  %v671 = vsel %vm486, %v478, 0
  %v674 = vsel %vm486, %v479, 0
  %v677 = vsel %vm486, %v480, 0
  %vm679 = vcmask 1043456
  %vm680 = vcmask 1044480
  %v681 = vsel %vm679, 4294967295, 65535
  %v682 = vsel %vm680, %v681, 0
  %v684 = vand.u32 %v485, %v682
  %686 = vmatprep.subr.bf16.mxu0 0
  %687 = vmatpush1.bf16.msra.mxu0 0
  %688 = vmatprep.subr.bf16.mxu0 0
  %689 = vmatpush1.bf16.msra.mxu0 0
  %690 = vmatprep.subr.bf16.mxu0 0
  %691 = vmatpush1.bf16.msra.mxu0 0
  %692 = vmatprep.subr.bf16.mxu0 0
  %693 = vmatpush1.bf16.msra.mxu0 0
  %694 = vmatprep.subr.bf16.mxu0 0
  %695 = vmatpush1.bf16.msra.mxu0 0
  %696 = vmatprep.subr.bf16.mxu0 0
  %697 = vmatpush1.bf16.msra.mxu0 0
  %698 = vmatprep.subr.bf16.mxu0 0
  %699 = vmatpush1.bf16.msra.mxu0 0
  %700 = vmatprep.subr.bf16.mxu0 0
  %701 = vmatpush1.bf16.msra.mxu0 %v684
  %702 = vmatprep.subr.bf16.mxu0 0
  %703 = vmatpush2.bf16.msra.mxu0 0
  %704 = vmatprep.subr.bf16.mxu0 0
  %705 = vmatpush2.bf16.msra.mxu0 0
  %706 = vmatprep.subr.bf16.mxu0 0
  %707 = vmatpush2.bf16.msra.mxu0 0
  %708 = vmatprep.subr.bf16.mxu0 0
  %709 = vmatpush2.bf16.msra.mxu0 0
  %710 = vmatprep.subr.bf16.mxu0 0
  %711 = vmatpush2.bf16.msra.mxu0 0
  %712 = vmatprep.subr.bf16.mxu0 0
  %713 = vmatpush2.bf16.msra.mxu0 0
  %714 = vmatprep.subr.bf16.mxu0 0
  %715 = vmatpush2.bf16.msra.mxu0 0
  %716 = vmatprep.subr.bf16.mxu0 0
  %717 = vmatpush2.bf16.msra.mxu0 0
  %718 = vmatprep.mubr.bf16.mxu0 0
  %719 = vmatmul.mubr.bf16.gmra.mxu0 %v488
  %v720 = vpop.f32.mrf.mxu0
  %v721 = vadd.f32 %v159, %v720
  %v722 = vpop.f32.mrf.mxu0
  %v723 = vpop.f32.mrf.mxu0
  %v724 = vadd.f32 %v159, %v723
  %v725 = vpop.f32.mrf.mxu0
  %726 = vmatprep.mubr.bf16.mxu0 0
  %727 = vmatmul.mubr.bf16.gmra.mxu0 %v491
  %v728 = vpop.f32.mrf.mxu0
  %v729 = vadd.f32 %v159, %v728
  %v730 = vpop.f32.mrf.mxu0
  %v731 = vpop.f32.mrf.mxu0
  %v732 = vadd.f32 %v159, %v731
  %v733 = vpop.f32.mrf.mxu0
  %734 = vmatprep.mubr.bf16.mxu0 0
  %735 = vmatmul.mubr.bf16.gmra.mxu0 %v494
  %v736 = vpop.f32.mrf.mxu0
  %v737 = vadd.f32 %v159, %v736
  %v738 = vpop.f32.mrf.mxu0
  %v739 = vpop.f32.mrf.mxu0
  %v740 = vadd.f32 %v159, %v739
  %v741 = vpop.f32.mrf.mxu0
  %742 = vmatprep.mubr.bf16.mxu0 0
  %743 = vmatmul.mubr.bf16.gmra.mxu0 %v497
  %v744 = vpop.f32.mrf.mxu0
  %v745 = vadd.f32 %v159, %v744
  %v746 = vpop.f32.mrf.mxu0
  %v747 = vpop.f32.mrf.mxu0
  %v748 = vadd.f32 %v159, %v747
  %v749 = vpop.f32.mrf.mxu0
  %750 = vmatprep.mubr.bf16.mxu0 0
  %751 = vmatmul.mubr.bf16.gmra.mxu0 %v500
  %v752 = vpop.f32.mrf.mxu0
  %v753 = vadd.f32 %v159, %v752
  %v754 = vpop.f32.mrf.mxu0
  %v755 = vpop.f32.mrf.mxu0
  %v756 = vadd.f32 %v159, %v755
  %v757 = vpop.f32.mrf.mxu0
  %758 = vmatprep.mubr.bf16.mxu0 0
  %759 = vmatmul.mubr.bf16.gmra.mxu0 %v503
  %v760 = vpop.f32.mrf.mxu0
  %v761 = vadd.f32 %v159, %v760
  %v762 = vpop.f32.mrf.mxu0
  %v763 = vpop.f32.mrf.mxu0
  %v764 = vadd.f32 %v159, %v763
  %v765 = vpop.f32.mrf.mxu0
  %766 = vmatprep.mubr.bf16.mxu0 0
  %767 = vmatmul.mubr.bf16.gmra.mxu0 %v506
  %v768 = vpop.f32.mrf.mxu0
  %v769 = vadd.f32 %v159, %v768
  %v770 = vpop.f32.mrf.mxu0
  %v771 = vpop.f32.mrf.mxu0
  %v772 = vadd.f32 %v159, %v771
  %v773 = vpop.f32.mrf.mxu0
  %774 = vmatprep.mubr.bf16.mxu0 0
  %775 = vmatmul.mubr.bf16.gmra.mxu0 %v509
  %v776 = vpop.f32.mrf.mxu0
  %v777 = vadd.f32 %v159, %v776
  %v778 = vpop.f32.mrf.mxu0
  %v779 = vpop.f32.mrf.mxu0
  %v780 = vadd.f32 %v159, %v779
  %v781 = vpop.f32.mrf.mxu0
  %782 = vmatprep.mubr.bf16.mxu0 0
  %783 = vmatmul.mubr.bf16.gmra.mxu0 %v512
  %v784 = vpop.f32.mrf.mxu0
  %v785 = vadd.f32 %v159, %v784
  %v786 = vpop.f32.mrf.mxu0
  %v787 = vpop.f32.mrf.mxu0
  %v788 = vadd.f32 %v159, %v787
  %v789 = vpop.f32.mrf.mxu0
  %790 = vmatprep.mubr.bf16.mxu0 0
  %791 = vmatmul.mubr.bf16.gmra.mxu0 %v515
  %v792 = vpop.f32.mrf.mxu0
  %v793 = vadd.f32 %v159, %v792
  %v794 = vpop.f32.mrf.mxu0
  %v795 = vpop.f32.mrf.mxu0
  %v796 = vadd.f32 %v159, %v795
  %v797 = vpop.f32.mrf.mxu0
  %798 = vmatprep.mubr.bf16.mxu0 0
  %799 = vmatmul.mubr.bf16.gmra.mxu0 %v518
  %v800 = vpop.f32.mrf.mxu0
  %v801 = vadd.f32 %v159, %v800
  %v802 = vpop.f32.mrf.mxu0
  %v803 = vpop.f32.mrf.mxu0
  %v804 = vadd.f32 %v159, %v803
  %v805 = vpop.f32.mrf.mxu0
  %806 = vmatprep.mubr.bf16.mxu0 0
  %807 = vmatmul.mubr.bf16.gmra.mxu0 %v521
  %v808 = vpop.f32.mrf.mxu0
  %v809 = vadd.f32 %v159, %v808
  %v810 = vpop.f32.mrf.mxu0
  %v811 = vpop.f32.mrf.mxu0
  %v812 = vadd.f32 %v159, %v811
  %v813 = vpop.f32.mrf.mxu0
  %814 = vmatprep.mubr.bf16.mxu0 0
  %815 = vmatmul.mubr.bf16.gmra.mxu0 %v524
  %v816 = vpop.f32.mrf.mxu0
  %v817 = vadd.f32 %v159, %v816
  %v818 = vpop.f32.mrf.mxu0
  %v819 = vpop.f32.mrf.mxu0
  %v820 = vadd.f32 %v159, %v819
  %v821 = vpop.f32.mrf.mxu0
  %822 = vmatprep.mubr.bf16.mxu0 0
  %823 = vmatmul.mubr.bf16.gmra.mxu0 %v527
  %v824 = vpop.f32.mrf.mxu0
  %v825 = vadd.f32 %v159, %v824
  %v826 = vpop.f32.mrf.mxu0
  %v827 = vpop.f32.mrf.mxu0
  %v828 = vadd.f32 %v159, %v827
  %v829 = vpop.f32.mrf.mxu0
  %830 = vmatprep.mubr.bf16.mxu0 0
  %831 = vmatmul.mubr.bf16.gmra.mxu0 %v530
  %v832 = vpop.f32.mrf.mxu0
  %v833 = vadd.f32 %v159, %v832
  %v834 = vpop.f32.mrf.mxu0
  %v835 = vpop.f32.mrf.mxu0
  %v836 = vadd.f32 %v159, %v835
  %v837 = vpop.f32.mrf.mxu0
  %838 = vmatprep.mubr.bf16.mxu0 0
  %839 = vmatmul.mubr.bf16.gmra.mxu0 %v533
  %v840 = vpop.f32.mrf.mxu0
  %v841 = vadd.f32 %v159, %v840
  %v842 = vpop.f32.mrf.mxu0
  %v843 = vpop.f32.mrf.mxu0
  %v844 = vadd.f32 %v159, %v843
  %v845 = vpop.f32.mrf.mxu0
  %846 = vmatprep.mubr.bf16.mxu0 0
  %847 = vmatmul.mubr.bf16.gmra.mxu0 %v536
  %v848 = vpop.f32.mrf.mxu0
  %v849 = vadd.f32 %v159, %v848
  %v850 = vpop.f32.mrf.mxu0
  %v851 = vpop.f32.mrf.mxu0
  %v852 = vadd.f32 %v159, %v851
  %v853 = vpop.f32.mrf.mxu0
  %854 = vmatprep.mubr.bf16.mxu0 0
  %855 = vmatmul.mubr.bf16.gmra.mxu0 %v539
  %v856 = vpop.f32.mrf.mxu0
  %v857 = vadd.f32 %v159, %v856
  %v858 = vpop.f32.mrf.mxu0
  %v859 = vpop.f32.mrf.mxu0
  %v860 = vadd.f32 %v159, %v859
  %v861 = vpop.f32.mrf.mxu0
  %862 = vmatprep.mubr.bf16.mxu0 0
  %863 = vmatmul.mubr.bf16.gmra.mxu0 %v542
  %v864 = vpop.f32.mrf.mxu0
  %v865 = vadd.f32 %v159, %v864
  %v866 = vpop.f32.mrf.mxu0
  %v867 = vpop.f32.mrf.mxu0
  %v868 = vadd.f32 %v159, %v867
  %v869 = vpop.f32.mrf.mxu0
  %870 = vmatprep.mubr.bf16.mxu0 0
  %871 = vmatmul.mubr.bf16.gmra.mxu0 %v545
  %v872 = vpop.f32.mrf.mxu0
  %v873 = vadd.f32 %v159, %v872
  %v874 = vpop.f32.mrf.mxu0
  %v875 = vpop.f32.mrf.mxu0
  %v876 = vadd.f32 %v159, %v875
  %v877 = vpop.f32.mrf.mxu0
  %878 = vmatprep.mubr.bf16.mxu0 0
  %879 = vmatmul.mubr.bf16.gmra.mxu0 %v548
  %v880 = vpop.f32.mrf.mxu0
  %v881 = vadd.f32 %v159, %v880
  %v882 = vpop.f32.mrf.mxu0
  %v883 = vpop.f32.mrf.mxu0
  %v884 = vadd.f32 %v159, %v883
  %v885 = vpop.f32.mrf.mxu0
  %886 = vmatprep.mubr.bf16.mxu0 0
  %887 = vmatmul.mubr.bf16.gmra.mxu0 %v551
  %v888 = vpop.f32.mrf.mxu0
  %v889 = vadd.f32 %v159, %v888
  %v890 = vpop.f32.mrf.mxu0
  %v891 = vpop.f32.mrf.mxu0
  %v892 = vadd.f32 %v159, %v891
  %v893 = vpop.f32.mrf.mxu0
  %894 = vmatprep.mubr.bf16.mxu0 0
  %895 = vmatmul.mubr.bf16.gmra.mxu0 %v554
  %v896 = vpop.f32.mrf.mxu0
  %v897 = vadd.f32 %v159, %v896
  %v898 = vpop.f32.mrf.mxu0
  %v899 = vpop.f32.mrf.mxu0
  %v900 = vadd.f32 %v159, %v899
  %v901 = vpop.f32.mrf.mxu0
  %902 = vmatprep.mubr.bf16.mxu0 0
  %903 = vmatmul.mubr.bf16.gmra.mxu0 %v557
  %v904 = vpop.f32.mrf.mxu0
  %v905 = vadd.f32 %v159, %v904
  %v906 = vpop.f32.mrf.mxu0
  %v907 = vpop.f32.mrf.mxu0
  %v908 = vadd.f32 %v159, %v907
  %v909 = vpop.f32.mrf.mxu0
  %910 = vmatprep.mubr.bf16.mxu0 0
  %911 = vmatmul.mubr.bf16.gmra.mxu0 %v560
  %v912 = vpop.f32.mrf.mxu0
  %v913 = vadd.f32 %v159, %v912
  %v914 = vpop.f32.mrf.mxu0
  %v915 = vpop.f32.mrf.mxu0
  %v916 = vadd.f32 %v159, %v915
  %v917 = vpop.f32.mrf.mxu0
  %918 = vmatprep.mubr.bf16.mxu0 0
  %919 = vmatmul.mubr.bf16.gmra.mxu0 %v563
  %v920 = vpop.f32.mrf.mxu0
  %v921 = vadd.f32 %v159, %v920
  %v922 = vpop.f32.mrf.mxu0
  %v923 = vpop.f32.mrf.mxu0
  %v924 = vadd.f32 %v159, %v923
  %v925 = vpop.f32.mrf.mxu0
  %926 = vmatprep.mubr.bf16.mxu0 0
  %927 = vmatmul.mubr.bf16.gmra.mxu0 %v566
  %v928 = vpop.f32.mrf.mxu0
  %v929 = vadd.f32 %v159, %v928
  %v930 = vpop.f32.mrf.mxu0
  %v931 = vpop.f32.mrf.mxu0
  %v932 = vadd.f32 %v159, %v931
  %v933 = vpop.f32.mrf.mxu0
  %934 = vmatprep.mubr.bf16.mxu0 0
  %935 = vmatmul.mubr.bf16.gmra.mxu0 %v569
  %v936 = vpop.f32.mrf.mxu0
  %v937 = vadd.f32 %v159, %v936
  %v938 = vpop.f32.mrf.mxu0
  %v939 = vpop.f32.mrf.mxu0
  %v940 = vadd.f32 %v159, %v939
  %v941 = vpop.f32.mrf.mxu0
  %942 = vmatprep.mubr.bf16.mxu0 0
  %943 = vmatmul.mubr.bf16.gmra.mxu0 %v572
  %v944 = vpop.f32.mrf.mxu0
  %v945 = vadd.f32 %v159, %v944
  %v946 = vpop.f32.mrf.mxu0
  %v947 = vpop.f32.mrf.mxu0
  %v948 = vadd.f32 %v159, %v947
  %v949 = vpop.f32.mrf.mxu0
  %950 = vmatprep.mubr.bf16.mxu0 0
  %951 = vmatmul.mubr.bf16.gmra.mxu0 %v575
  %v952 = vpop.f32.mrf.mxu0
  %v953 = vadd.f32 %v159, %v952
  %v954 = vpop.f32.mrf.mxu0
  %v955 = vpop.f32.mrf.mxu0
  %v956 = vadd.f32 %v159, %v955
  %v957 = vpop.f32.mrf.mxu0
  %958 = vmatprep.mubr.bf16.mxu0 0
  %959 = vmatmul.mubr.bf16.gmra.mxu0 %v578
  %v960 = vpop.f32.mrf.mxu0
  %v961 = vadd.f32 %v159, %v960
  %v962 = vpop.f32.mrf.mxu0
  %v963 = vpop.f32.mrf.mxu0
  %v964 = vadd.f32 %v159, %v963
  %v965 = vpop.f32.mrf.mxu0
  %966 = vmatprep.mubr.bf16.mxu0 0
  %967 = vmatmul.mubr.bf16.gmra.mxu0 %v581
  %v968 = vpop.f32.mrf.mxu0
  %v969 = vadd.f32 %v159, %v968
  %v970 = vpop.f32.mrf.mxu0
  %v971 = vpop.f32.mrf.mxu0
  %v972 = vadd.f32 %v159, %v971
  %v973 = vpop.f32.mrf.mxu0
  %974 = vmatprep.mubr.bf16.mxu0 0
  %975 = vmatmul.mubr.bf16.gmra.mxu0 %v584
  %v976 = vpop.f32.mrf.mxu0
  %v977 = vadd.f32 %v159, %v976
  %v978 = vpop.f32.mrf.mxu0
  %v979 = vpop.f32.mrf.mxu0
  %v980 = vadd.f32 %v159, %v979
  %v981 = vpop.f32.mrf.mxu0
  %982 = vmatprep.mubr.bf16.mxu0 0
  %983 = vmatmul.mubr.bf16.gmra.mxu0 %v587
  %v984 = vpop.f32.mrf.mxu0
  %v985 = vadd.f32 %v159, %v984
  %v986 = vpop.f32.mrf.mxu0
  %v987 = vpop.f32.mrf.mxu0
  %v988 = vadd.f32 %v159, %v987
  %v989 = vpop.f32.mrf.mxu0
  %990 = vmatprep.mubr.bf16.mxu0 0
  %991 = vmatmul.mubr.bf16.gmra.mxu0 %v590
  %v992 = vpop.f32.mrf.mxu0
  %v993 = vadd.f32 %v159, %v992
  %v994 = vpop.f32.mrf.mxu0
  %v995 = vpop.f32.mrf.mxu0
  %v996 = vadd.f32 %v159, %v995
  %v997 = vpop.f32.mrf.mxu0
  %998 = vmatprep.mubr.bf16.mxu0 0
  %999 = vmatmul.mubr.bf16.gmra.mxu0 %v593
  %v1000 = vpop.f32.mrf.mxu0
  %v1001 = vadd.f32 %v159, %v1000
  %v1002 = vpop.f32.mrf.mxu0
  %v1003 = vpop.f32.mrf.mxu0
  %v1004 = vadd.f32 %v159, %v1003
  %v1005 = vpop.f32.mrf.mxu0
  %1006 = vmatprep.mubr.bf16.mxu0 0
  %1007 = vmatmul.mubr.bf16.gmra.mxu0 %v596
  %v1008 = vpop.f32.mrf.mxu0
  %v1009 = vadd.f32 %v159, %v1008
  %v1010 = vpop.f32.mrf.mxu0
  %v1011 = vpop.f32.mrf.mxu0
  %v1012 = vadd.f32 %v159, %v1011
  %v1013 = vpop.f32.mrf.mxu0
  %1014 = vmatprep.mubr.bf16.mxu0 0
  %1015 = vmatmul.mubr.bf16.gmra.mxu0 %v599
  %v1016 = vpop.f32.mrf.mxu0
  %v1017 = vadd.f32 %v159, %v1016
  %v1018 = vpop.f32.mrf.mxu0
  %v1019 = vpop.f32.mrf.mxu0
  %v1020 = vadd.f32 %v159, %v1019
  %v1021 = vpop.f32.mrf.mxu0
  %1022 = vmatprep.mubr.bf16.mxu0 0
  %1023 = vmatmul.mubr.bf16.gmra.mxu0 %v602
  %v1024 = vpop.f32.mrf.mxu0
  %v1025 = vadd.f32 %v159, %v1024
  %v1026 = vpop.f32.mrf.mxu0
  %v1027 = vpop.f32.mrf.mxu0
  %v1028 = vadd.f32 %v159, %v1027
  %v1029 = vpop.f32.mrf.mxu0
  %1030 = vmatprep.mubr.bf16.mxu0 0
  %1031 = vmatmul.mubr.bf16.gmra.mxu0 %v605
  %v1032 = vpop.f32.mrf.mxu0
  %v1033 = vadd.f32 %v159, %v1032
  %v1034 = vpop.f32.mrf.mxu0
  %v1035 = vpop.f32.mrf.mxu0
  %v1036 = vadd.f32 %v159, %v1035
  %v1037 = vpop.f32.mrf.mxu0
  %1038 = vmatprep.mubr.bf16.mxu0 0
  %1039 = vmatmul.mubr.bf16.gmra.mxu0 %v608
  %v1040 = vpop.f32.mrf.mxu0
  %v1041 = vadd.f32 %v159, %v1040
  %v1042 = vpop.f32.mrf.mxu0
  %v1043 = vpop.f32.mrf.mxu0
  %v1044 = vadd.f32 %v159, %v1043
  %v1045 = vpop.f32.mrf.mxu0
  %1046 = vmatprep.mubr.bf16.mxu0 0
  %1047 = vmatmul.mubr.bf16.gmra.mxu0 %v611
  %v1048 = vpop.f32.mrf.mxu0
  %v1049 = vadd.f32 %v159, %v1048
  %v1050 = vpop.f32.mrf.mxu0
  %v1051 = vpop.f32.mrf.mxu0
  %v1052 = vadd.f32 %v159, %v1051
  %v1053 = vpop.f32.mrf.mxu0
  %1054 = vmatprep.mubr.bf16.mxu0 0
  %1055 = vmatmul.mubr.bf16.gmra.mxu0 %v614
  %v1056 = vpop.f32.mrf.mxu0
  %v1057 = vadd.f32 %v159, %v1056
  %v1058 = vpop.f32.mrf.mxu0
  %v1059 = vpop.f32.mrf.mxu0
  %v1060 = vadd.f32 %v159, %v1059
  %v1061 = vpop.f32.mrf.mxu0
  %1062 = vmatprep.mubr.bf16.mxu0 0
  %1063 = vmatmul.mubr.bf16.gmra.mxu0 %v617
  %v1064 = vpop.f32.mrf.mxu0
  %v1065 = vadd.f32 %v159, %v1064
  %v1066 = vpop.f32.mrf.mxu0
  %v1067 = vpop.f32.mrf.mxu0
  %v1068 = vadd.f32 %v159, %v1067
  %v1069 = vpop.f32.mrf.mxu0
  %1070 = vmatprep.mubr.bf16.mxu0 0
  %1071 = vmatmul.mubr.bf16.gmra.mxu0 %v620
  %v1072 = vpop.f32.mrf.mxu0
  %v1073 = vadd.f32 %v159, %v1072
  %v1074 = vpop.f32.mrf.mxu0
  %v1075 = vpop.f32.mrf.mxu0
  %v1076 = vadd.f32 %v159, %v1075
  %v1077 = vpop.f32.mrf.mxu0
  %1078 = vmatprep.mubr.bf16.mxu0 0
  %1079 = vmatmul.mubr.bf16.gmra.mxu0 %v623
  %v1080 = vpop.f32.mrf.mxu0
  %v1081 = vadd.f32 %v159, %v1080
  %v1082 = vpop.f32.mrf.mxu0
  %v1083 = vpop.f32.mrf.mxu0
  %v1084 = vadd.f32 %v159, %v1083
  %v1085 = vpop.f32.mrf.mxu0
  %1086 = vmatprep.mubr.bf16.mxu0 0
  %1087 = vmatmul.mubr.bf16.gmra.mxu0 %v626
  %v1088 = vpop.f32.mrf.mxu0
  %v1089 = vadd.f32 %v159, %v1088
  %v1090 = vpop.f32.mrf.mxu0
  %v1091 = vpop.f32.mrf.mxu0
  %v1092 = vadd.f32 %v159, %v1091
  %v1093 = vpop.f32.mrf.mxu0
  %1094 = vmatprep.mubr.bf16.mxu0 0
  %1095 = vmatmul.mubr.bf16.gmra.mxu0 %v629
  %v1096 = vpop.f32.mrf.mxu0
  %v1097 = vadd.f32 %v159, %v1096
  %v1098 = vpop.f32.mrf.mxu0
  %v1099 = vpop.f32.mrf.mxu0
  %v1100 = vadd.f32 %v159, %v1099
  %v1101 = vpop.f32.mrf.mxu0
  %1102 = vmatprep.mubr.bf16.mxu0 0
  %1103 = vmatmul.mubr.bf16.gmra.mxu0 %v632
  %v1104 = vpop.f32.mrf.mxu0
  %v1105 = vadd.f32 %v159, %v1104
  %v1106 = vpop.f32.mrf.mxu0
  %v1107 = vpop.f32.mrf.mxu0
  %v1108 = vadd.f32 %v159, %v1107
  %v1109 = vpop.f32.mrf.mxu0
  %1110 = vmatprep.mubr.bf16.mxu0 0
  %1111 = vmatmul.mubr.bf16.gmra.mxu0 %v635
  %v1112 = vpop.f32.mrf.mxu0
  %v1113 = vadd.f32 %v159, %v1112
  %v1114 = vpop.f32.mrf.mxu0
  %v1115 = vpop.f32.mrf.mxu0
  %v1116 = vadd.f32 %v159, %v1115
  %v1117 = vpop.f32.mrf.mxu0
  %1118 = vmatprep.mubr.bf16.mxu0 0
  %1119 = vmatmul.mubr.bf16.gmra.mxu0 %v638
  %v1120 = vpop.f32.mrf.mxu0
  %v1121 = vadd.f32 %v159, %v1120
  %v1122 = vpop.f32.mrf.mxu0
  %v1123 = vpop.f32.mrf.mxu0
  %v1124 = vadd.f32 %v159, %v1123
  %v1125 = vpop.f32.mrf.mxu0
  %1126 = vmatprep.mubr.bf16.mxu0 0
  %1127 = vmatmul.mubr.bf16.gmra.mxu0 %v641
  %v1128 = vpop.f32.mrf.mxu0
  %v1129 = vadd.f32 %v159, %v1128
  %v1130 = vpop.f32.mrf.mxu0
  %v1131 = vpop.f32.mrf.mxu0
  %v1132 = vadd.f32 %v159, %v1131
  %v1133 = vpop.f32.mrf.mxu0
  %1134 = vmatprep.mubr.bf16.mxu0 0
  %1135 = vmatmul.mubr.bf16.gmra.mxu0 %v644
  %v1136 = vpop.f32.mrf.mxu0
  %v1137 = vadd.f32 %v159, %v1136
  %v1138 = vpop.f32.mrf.mxu0
  %v1139 = vpop.f32.mrf.mxu0
  %v1140 = vadd.f32 %v159, %v1139
  %v1141 = vpop.f32.mrf.mxu0
  %1142 = vmatprep.mubr.bf16.mxu0 0
  %1143 = vmatmul.mubr.bf16.gmra.mxu0 %v647
  %v1144 = vpop.f32.mrf.mxu0
  %v1145 = vadd.f32 %v159, %v1144
  %v1146 = vpop.f32.mrf.mxu0
  %v1147 = vpop.f32.mrf.mxu0
  %v1148 = vadd.f32 %v159, %v1147
  %v1149 = vpop.f32.mrf.mxu0
  %1150 = vmatprep.mubr.bf16.mxu0 0
  %1151 = vmatmul.mubr.bf16.gmra.mxu0 %v650
  %v1152 = vpop.f32.mrf.mxu0
  %v1153 = vadd.f32 %v159, %v1152
  %v1154 = vpop.f32.mrf.mxu0
  %v1155 = vpop.f32.mrf.mxu0
  %v1156 = vadd.f32 %v159, %v1155
  %v1157 = vpop.f32.mrf.mxu0
  %1158 = vmatprep.mubr.bf16.mxu0 0
  %1159 = vmatmul.mubr.bf16.gmra.mxu0 %v653
  %v1160 = vpop.f32.mrf.mxu0
  %v1161 = vadd.f32 %v159, %v1160
  %v1162 = vpop.f32.mrf.mxu0
  %v1163 = vpop.f32.mrf.mxu0
  %v1164 = vadd.f32 %v159, %v1163
  %v1165 = vpop.f32.mrf.mxu0
  %1166 = vmatprep.mubr.bf16.mxu0 0
  %1167 = vmatmul.mubr.bf16.gmra.mxu0 %v656
  %v1168 = vpop.f32.mrf.mxu0
  %v1169 = vadd.f32 %v159, %v1168
  %v1170 = vpop.f32.mrf.mxu0
  %v1171 = vpop.f32.mrf.mxu0
  %v1172 = vadd.f32 %v159, %v1171
  %v1173 = vpop.f32.mrf.mxu0
  %1174 = vmatprep.mubr.bf16.mxu0 0
  %1175 = vmatmul.mubr.bf16.gmra.mxu0 %v659
  %v1176 = vpop.f32.mrf.mxu0
  %v1177 = vadd.f32 %v159, %v1176
  %v1178 = vpop.f32.mrf.mxu0
  %v1179 = vpop.f32.mrf.mxu0
  %v1180 = vadd.f32 %v159, %v1179
  %v1181 = vpop.f32.mrf.mxu0
  %1182 = vmatprep.mubr.bf16.mxu0 0
  %1183 = vmatmul.mubr.bf16.gmra.mxu0 %v662
  %v1184 = vpop.f32.mrf.mxu0
  %v1185 = vadd.f32 %v159, %v1184
  %v1186 = vpop.f32.mrf.mxu0
  %v1187 = vpop.f32.mrf.mxu0
  %v1188 = vadd.f32 %v159, %v1187
  %v1189 = vpop.f32.mrf.mxu0
  %1190 = vmatprep.mubr.bf16.mxu0 0
  %1191 = vmatmul.mubr.bf16.gmra.mxu0 %v665
  %v1192 = vpop.f32.mrf.mxu0
  %v1193 = vadd.f32 %v159, %v1192
  %v1194 = vpop.f32.mrf.mxu0
  %v1195 = vpop.f32.mrf.mxu0
  %v1196 = vadd.f32 %v159, %v1195
  %v1197 = vpop.f32.mrf.mxu0
  %1198 = vmatprep.mubr.bf16.mxu0 0
  %1199 = vmatmul.mubr.bf16.gmra.mxu0 %v668
  %v1200 = vpop.f32.mrf.mxu0
  %v1201 = vadd.f32 %v159, %v1200
  %v1202 = vpop.f32.mrf.mxu0
  %v1203 = vpop.f32.mrf.mxu0
  %v1204 = vadd.f32 %v159, %v1203
  %v1205 = vpop.f32.mrf.mxu0
  %1206 = vmatprep.mubr.bf16.mxu0 0
  %1207 = vmatmul.mubr.bf16.gmra.mxu0 %v671
  %v1208 = vpop.f32.mrf.mxu0
  %v1209 = vadd.f32 %v159, %v1208
  %v1210 = vpop.f32.mrf.mxu0
  %v1211 = vpop.f32.mrf.mxu0
  %v1212 = vadd.f32 %v159, %v1211
  %v1213 = vpop.f32.mrf.mxu0
  %1214 = vmatprep.mubr.bf16.mxu0 0
  %1215 = vmatmul.mubr.bf16.gmra.mxu0 %v674
  %v1216 = vpop.f32.mrf.mxu0
  %v1217 = vadd.f32 %v159, %v1216
  %v1218 = vpop.f32.mrf.mxu0
  %v1219 = vpop.f32.mrf.mxu0
  %v1220 = vadd.f32 %v159, %v1219
  %v1221 = vpop.f32.mrf.mxu0
  %1222 = vmatprep.mubr.bf16.mxu0 0
  %1223 = vmatmul.mubr.bf16.gmra.mxu0 %v677
  %v1224 = vpop.f32.mrf.mxu0
  %v1225 = vadd.f32 %v159, %v1224
  %v1226 = vpop.f32.mrf.mxu0
  %v1227 = vpop.f32.mrf.mxu0
  %v1228 = vadd.f32 %v159, %v1227
  %v1229 = vpop.f32.mrf.mxu0
  %1230 = vdwg.mxu0
  %v1231 = vmax.f32 %v721, 0.0
  %v1232 = vmax.f32 %v724, 0.0
  %v1233 = vmax.f32 %v729, 0.0
  %v1234 = vmax.f32 %v732, 0.0
  %v1235 = vmax.f32 %v737, 0.0
  %v1236 = vmax.f32 %v740, 0.0
  %v1237 = vmax.f32 %v745, 0.0
  %v1238 = vmax.f32 %v748, 0.0
  %v1239 = vmax.f32 %v753, 0.0
  %v1240 = vmax.f32 %v756, 0.0
  %v1241 = vmax.f32 %v761, 0.0
  %v1242 = vmax.f32 %v764, 0.0
  %v1243 = vmax.f32 %v769, 0.0
  %v1244 = vmax.f32 %v772, 0.0
  %v1245 = vmax.f32 %v777, 0.0
  %v1246 = vmax.f32 %v780, 0.0
  %v1247 = vmax.f32 %v785, 0.0
  %v1248 = vmax.f32 %v788, 0.0
  %v1249 = vmax.f32 %v793, 0.0
  %v1250 = vmax.f32 %v796, 0.0
  %v1251 = vmax.f32 %v801, 0.0
  %v1252 = vmax.f32 %v804, 0.0
  %v1253 = vmax.f32 %v809, 0.0
  %v1254 = vmax.f32 %v812, 0.0
  %v1255 = vmax.f32 %v817, 0.0
  %v1256 = vmax.f32 %v820, 0.0
  %v1257 = vmax.f32 %v825, 0.0
  %v1258 = vmax.f32 %v828, 0.0
  %v1259 = vmax.f32 %v833, 0.0
  %v1260 = vmax.f32 %v836, 0.0
  %v1261 = vmax.f32 %v841, 0.0
  %v1262 = vmax.f32 %v844, 0.0
  %v1263 = vmax.f32 %v849, 0.0
  %v1264 = vmax.f32 %v852, 0.0
  %v1265 = vmax.f32 %v857, 0.0
  %v1266 = vmax.f32 %v860, 0.0
  %v1267 = vmax.f32 %v865, 0.0
  %v1268 = vmax.f32 %v868, 0.0
  %v1269 = vmax.f32 %v873, 0.0
  %v1270 = vmax.f32 %v876, 0.0
  %v1271 = vmax.f32 %v881, 0.0
  %v1272 = vmax.f32 %v884, 0.0
  %v1273 = vmax.f32 %v889, 0.0
  %v1274 = vmax.f32 %v892, 0.0
  %v1275 = vmax.f32 %v897, 0.0
  %v1276 = vmax.f32 %v900, 0.0
  %v1277 = vmax.f32 %v905, 0.0
  %v1278 = vmax.f32 %v908, 0.0
  %v1279 = vmax.f32 %v913, 0.0
  %v1280 = vmax.f32 %v916, 0.0
  %v1281 = vmax.f32 %v921, 0.0
  %v1282 = vmax.f32 %v924, 0.0
  %v1283 = vmax.f32 %v929, 0.0
  %v1284 = vmax.f32 %v932, 0.0
  %v1285 = vmax.f32 %v937, 0.0
  %v1286 = vmax.f32 %v940, 0.0
  %v1287 = vmax.f32 %v945, 0.0
  %v1288 = vmax.f32 %v948, 0.0
  %v1289 = vmax.f32 %v953, 0.0
  %v1290 = vmax.f32 %v956, 0.0
  %v1291 = vmax.f32 %v961, 0.0
  %v1292 = vmax.f32 %v964, 0.0
  %v1293 = vmax.f32 %v969, 0.0
  %v1294 = vmax.f32 %v972, 0.0
  %v1295 = vmax.f32 %v977, 0.0
  %v1296 = vmax.f32 %v980, 0.0
  %v1297 = vmax.f32 %v985, 0.0
  %v1298 = vmax.f32 %v988, 0.0
  %v1299 = vmax.f32 %v993, 0.0
  %v1300 = vmax.f32 %v996, 0.0
  %v1301 = vmax.f32 %v1001, 0.0
  %v1302 = vmax.f32 %v1004, 0.0
  %v1303 = vmax.f32 %v1009, 0.0
  %v1304 = vmax.f32 %v1012, 0.0
  %v1305 = vmax.f32 %v1017, 0.0
  %v1306 = vmax.f32 %v1020, 0.0
  %v1307 = vmax.f32 %v1025, 0.0
  %v1308 = vmax.f32 %v1028, 0.0
  %v1309 = vmax.f32 %v1033, 0.0
  %v1310 = vmax.f32 %v1036, 0.0
  %v1311 = vmax.f32 %v1041, 0.0
  %v1312 = vmax.f32 %v1044, 0.0
  %v1313 = vmax.f32 %v1049, 0.0
  %v1314 = vmax.f32 %v1052, 0.0
  %v1315 = vmax.f32 %v1057, 0.0
  %v1316 = vmax.f32 %v1060, 0.0
  %v1317 = vmax.f32 %v1065, 0.0
  %v1318 = vmax.f32 %v1068, 0.0
  %v1319 = vmax.f32 %v1073, 0.0
  %v1320 = vmax.f32 %v1076, 0.0
  %v1321 = vmax.f32 %v1081, 0.0
  %v1322 = vmax.f32 %v1084, 0.0
  %v1323 = vmax.f32 %v1089, 0.0
  %v1324 = vmax.f32 %v1092, 0.0
  %v1325 = vmax.f32 %v1097, 0.0
  %v1326 = vmax.f32 %v1100, 0.0
  %v1327 = vmax.f32 %v1105, 0.0
  %v1328 = vmax.f32 %v1108, 0.0
  %v1329 = vmax.f32 %v1113, 0.0
  %v1330 = vmax.f32 %v1116, 0.0
  %v1331 = vmax.f32 %v1121, 0.0
  %v1332 = vmax.f32 %v1124, 0.0
  %v1333 = vmax.f32 %v1129, 0.0
  %v1334 = vmax.f32 %v1132, 0.0
  %v1335 = vmax.f32 %v1137, 0.0
  %v1336 = vmax.f32 %v1140, 0.0
  %v1337 = vmax.f32 %v1145, 0.0
  %v1338 = vmax.f32 %v1148, 0.0
  %v1339 = vmax.f32 %v1153, 0.0
  %v1340 = vmax.f32 %v1156, 0.0
  %v1341 = vmax.f32 %v1161, 0.0
  %v1342 = vmax.f32 %v1164, 0.0
  %v1343 = vmax.f32 %v1169, 0.0
  %v1344 = vmax.f32 %v1172, 0.0
  %v1345 = vmax.f32 %v1177, 0.0
  %v1346 = vmax.f32 %v1180, 0.0
  %v1347 = vmax.f32 %v1185, 0.0
  %v1348 = vmax.f32 %v1188, 0.0
  %v1349 = vmax.f32 %v1193, 0.0
  %v1350 = vmax.f32 %v1196, 0.0
  %v1351 = vmax.f32 %v1201, 0.0
  %v1352 = vmax.f32 %v1204, 0.0
  %v1353 = vmax.f32 %v1209, 0.0
  %v1354 = vmax.f32 %v1212, 0.0
  %v1355 = vmax.f32 %v1217, 0.0
  %v1356 = vmax.f32 %v1220, 0.0
  %v1357 = vmax.f32 %v1225, 0.0
  %v1358 = vmax.f32 %v1228, 0.0
  %vm1359 = vcmask 261120
  %v1360 = vsel %vm1359, %v1231, 0.0
  %v1361 = vsel %vm1359, %v1233, 0.0
  %v1362 = vadd.f32 %v1360, %v1361
  %v1363 = vsel %vm1359, %v1235, 0.0
  %v1364 = vadd.f32 %v1362, %v1363
  %v1365 = vsel %vm1359, %v1237, 0.0
  %v1366 = vadd.f32 %v1364, %v1365
  %v1367 = vsel %vm1359, %v1239, 0.0
  %v1368 = vadd.f32 %v1366, %v1367
  %v1369 = vsel %vm1359, %v1241, 0.0
  %v1370 = vadd.f32 %v1368, %v1369
  %v1371 = vsel %vm1359, %v1243, 0.0
  %v1372 = vadd.f32 %v1370, %v1371
  %v1373 = vsel %vm1359, %v1245, 0.0
  %v1374 = vadd.f32 %v1372, %v1373
  %v1375 = vsel %vm1359, %v1247, 0.0
  %v1376 = vadd.f32 %v1374, %v1375
  %v1377 = vsel %vm1359, %v1249, 0.0
  %v1378 = vadd.f32 %v1376, %v1377
  %v1379 = vsel %vm1359, %v1251, 0.0
  %v1380 = vadd.f32 %v1378, %v1379
  %v1381 = vsel %vm1359, %v1253, 0.0
  %v1382 = vadd.f32 %v1380, %v1381
  %v1383 = vsel %vm1359, %v1255, 0.0
  %v1384 = vadd.f32 %v1382, %v1383
  %v1385 = vsel %vm1359, %v1257, 0.0
  %v1386 = vadd.f32 %v1384, %v1385
  %v1387 = vsel %vm1359, %v1259, 0.0
  %v1388 = vadd.f32 %v1386, %v1387
  %v1389 = vsel %vm1359, %v1261, 0.0
  %v1390 = vadd.f32 %v1388, %v1389
  %v1391 = vsel %vm1359, %v1232, 0.0
  %v1392 = vsel %vm1359, %v1234, 0.0
  %v1393 = vadd.f32 %v1391, %v1392
  %v1394 = vsel %vm1359, %v1236, 0.0
  %v1395 = vadd.f32 %v1393, %v1394
  %v1396 = vsel %vm1359, %v1238, 0.0
  %v1397 = vadd.f32 %v1395, %v1396
  %v1398 = vsel %vm1359, %v1240, 0.0
  %v1399 = vadd.f32 %v1397, %v1398
  %v1400 = vsel %vm1359, %v1242, 0.0
  %v1401 = vadd.f32 %v1399, %v1400
  %v1402 = vsel %vm1359, %v1244, 0.0
  %v1403 = vadd.f32 %v1401, %v1402
  %v1404 = vsel %vm1359, %v1246, 0.0
  %v1405 = vadd.f32 %v1403, %v1404
  %v1406 = vsel %vm1359, %v1248, 0.0
  %v1407 = vadd.f32 %v1405, %v1406
  %v1408 = vsel %vm1359, %v1250, 0.0
  %v1409 = vadd.f32 %v1407, %v1408
  %v1410 = vsel %vm1359, %v1252, 0.0
  %v1411 = vadd.f32 %v1409, %v1410
  %v1412 = vsel %vm1359, %v1254, 0.0
  %v1413 = vadd.f32 %v1411, %v1412
  %v1414 = vsel %vm1359, %v1256, 0.0
  %v1415 = vadd.f32 %v1413, %v1414
  %v1416 = vsel %vm1359, %v1258, 0.0
  %v1417 = vadd.f32 %v1415, %v1416
  %v1418 = vsel %vm1359, %v1260, 0.0
  %v1419 = vadd.f32 %v1417, %v1418
  %v1420 = vsel %vm1359, %v1262, 0.0
  %v1421 = vadd.f32 %v1419, %v1420
  %v1422 = vsel %vm1359, %v1263, 0.0
  %v1423 = vsel %vm1359, %v1265, 0.0
  %v1424 = vadd.f32 %v1422, %v1423
  %v1425 = vsel %vm1359, %v1267, 0.0
  %v1426 = vadd.f32 %v1424, %v1425
  %v1427 = vsel %vm1359, %v1269, 0.0
  %v1428 = vadd.f32 %v1426, %v1427
  %v1429 = vsel %vm1359, %v1271, 0.0
  %v1430 = vadd.f32 %v1428, %v1429
  %v1431 = vsel %vm1359, %v1273, 0.0
  %v1432 = vadd.f32 %v1430, %v1431
  %v1433 = vsel %vm1359, %v1275, 0.0
  %v1434 = vadd.f32 %v1432, %v1433
  %v1435 = vsel %vm1359, %v1277, 0.0
  %v1436 = vadd.f32 %v1434, %v1435
  %v1437 = vsel %vm1359, %v1279, 0.0
  %v1438 = vadd.f32 %v1436, %v1437
  %v1439 = vsel %vm1359, %v1281, 0.0
  %v1440 = vadd.f32 %v1438, %v1439
  %v1441 = vsel %vm1359, %v1283, 0.0
  %v1442 = vadd.f32 %v1440, %v1441
  %v1443 = vsel %vm1359, %v1285, 0.0
  %v1444 = vadd.f32 %v1442, %v1443
  %v1445 = vsel %vm1359, %v1287, 0.0
  %v1446 = vadd.f32 %v1444, %v1445
  %v1447 = vsel %vm1359, %v1289, 0.0
  %v1448 = vadd.f32 %v1446, %v1447
  %v1449 = vsel %vm1359, %v1291, 0.0
  %v1450 = vadd.f32 %v1448, %v1449
  %v1451 = vsel %vm1359, %v1293, 0.0
  %v1452 = vadd.f32 %v1450, %v1451
  %v1453 = vsel %vm1359, %v1264, 0.0
  %v1454 = vsel %vm1359, %v1266, 0.0
  %v1455 = vadd.f32 %v1453, %v1454
  %v1456 = vsel %vm1359, %v1268, 0.0
  %v1457 = vadd.f32 %v1455, %v1456
  %v1458 = vsel %vm1359, %v1270, 0.0
  %v1459 = vadd.f32 %v1457, %v1458
  %v1460 = vsel %vm1359, %v1272, 0.0
  %v1461 = vadd.f32 %v1459, %v1460
  %v1462 = vsel %vm1359, %v1274, 0.0
  %v1463 = vadd.f32 %v1461, %v1462
  %v1464 = vsel %vm1359, %v1276, 0.0
  %v1465 = vadd.f32 %v1463, %v1464
  %v1466 = vsel %vm1359, %v1278, 0.0
  %v1467 = vadd.f32 %v1465, %v1466
  %v1468 = vsel %vm1359, %v1280, 0.0
  %v1469 = vadd.f32 %v1467, %v1468
  %v1470 = vsel %vm1359, %v1282, 0.0
  %v1471 = vadd.f32 %v1469, %v1470
  %v1472 = vsel %vm1359, %v1284, 0.0
  %v1473 = vadd.f32 %v1471, %v1472
  %v1474 = vsel %vm1359, %v1286, 0.0
  %v1475 = vadd.f32 %v1473, %v1474
  %v1476 = vsel %vm1359, %v1288, 0.0
  %v1477 = vadd.f32 %v1475, %v1476
  %v1478 = vsel %vm1359, %v1290, 0.0
  %v1479 = vadd.f32 %v1477, %v1478
  %v1480 = vsel %vm1359, %v1292, 0.0
  %v1481 = vadd.f32 %v1479, %v1480
  %v1482 = vsel %vm1359, %v1294, 0.0
  %v1483 = vadd.f32 %v1481, %v1482
  %v1484 = vsel %vm1359, %v1295, 0.0
  %v1485 = vsel %vm1359, %v1297, 0.0
  %v1486 = vadd.f32 %v1484, %v1485
  %v1487 = vsel %vm1359, %v1299, 0.0
  %v1488 = vadd.f32 %v1486, %v1487
  %v1489 = vsel %vm1359, %v1301, 0.0
  %v1490 = vadd.f32 %v1488, %v1489
  %v1491 = vsel %vm1359, %v1303, 0.0
  %v1492 = vadd.f32 %v1490, %v1491
  %v1493 = vsel %vm1359, %v1305, 0.0
  %v1494 = vadd.f32 %v1492, %v1493
  %v1495 = vsel %vm1359, %v1307, 0.0
  %v1496 = vadd.f32 %v1494, %v1495
  %v1497 = vsel %vm1359, %v1309, 0.0
  %v1498 = vadd.f32 %v1496, %v1497
  %v1499 = vsel %vm1359, %v1311, 0.0
  %v1500 = vadd.f32 %v1498, %v1499
  %v1501 = vsel %vm1359, %v1313, 0.0
  %v1502 = vadd.f32 %v1500, %v1501
  %v1503 = vsel %vm1359, %v1315, 0.0
  %v1504 = vadd.f32 %v1502, %v1503
  %v1505 = vsel %vm1359, %v1317, 0.0
  %v1506 = vadd.f32 %v1504, %v1505
  %v1507 = vsel %vm1359, %v1319, 0.0
  %v1508 = vadd.f32 %v1506, %v1507
  %v1509 = vsel %vm1359, %v1321, 0.0
  %v1510 = vadd.f32 %v1508, %v1509
  %v1511 = vsel %vm1359, %v1323, 0.0
  %v1512 = vadd.f32 %v1510, %v1511
  %v1513 = vsel %vm1359, %v1325, 0.0
  %v1514 = vadd.f32 %v1512, %v1513
  %v1515 = vsel %vm1359, %v1296, 0.0
  %v1516 = vsel %vm1359, %v1298, 0.0
  %v1517 = vadd.f32 %v1515, %v1516
  %v1518 = vsel %vm1359, %v1300, 0.0
  %v1519 = vadd.f32 %v1517, %v1518
  %v1520 = vsel %vm1359, %v1302, 0.0
  %v1521 = vadd.f32 %v1519, %v1520
  %v1522 = vsel %vm1359, %v1304, 0.0
  %v1523 = vadd.f32 %v1521, %v1522
  %v1524 = vsel %vm1359, %v1306, 0.0
  %v1525 = vadd.f32 %v1523, %v1524
  %v1526 = vsel %vm1359, %v1308, 0.0
  %v1527 = vadd.f32 %v1525, %v1526
  %v1528 = vsel %vm1359, %v1310, 0.0
  %v1529 = vadd.f32 %v1527, %v1528
  %v1530 = vsel %vm1359, %v1312, 0.0
  %v1531 = vadd.f32 %v1529, %v1530
  %v1532 = vsel %vm1359, %v1314, 0.0
  %v1533 = vadd.f32 %v1531, %v1532
  %v1534 = vsel %vm1359, %v1316, 0.0
  %v1535 = vadd.f32 %v1533, %v1534
  %v1536 = vsel %vm1359, %v1318, 0.0
  %v1537 = vadd.f32 %v1535, %v1536
  %v1538 = vsel %vm1359, %v1320, 0.0
  %v1539 = vadd.f32 %v1537, %v1538
  %v1540 = vsel %vm1359, %v1322, 0.0
  %v1541 = vadd.f32 %v1539, %v1540
  %v1542 = vsel %vm1359, %v1324, 0.0
  %v1543 = vadd.f32 %v1541, %v1542
  %v1544 = vsel %vm1359, %v1326, 0.0
  %v1545 = vadd.f32 %v1543, %v1544
  %v1546 = vsel %vm1359, %v1327, 0.0
  %v1547 = vsel %vm1359, %v1329, 0.0
  %v1548 = vadd.f32 %v1546, %v1547
  %v1549 = vsel %vm1359, %v1331, 0.0
  %v1550 = vadd.f32 %v1548, %v1549
  %v1551 = vsel %vm1359, %v1333, 0.0
  %v1552 = vadd.f32 %v1550, %v1551
  %v1553 = vsel %vm1359, %v1335, 0.0
  %v1554 = vadd.f32 %v1552, %v1553
  %v1555 = vsel %vm1359, %v1337, 0.0
  %v1556 = vadd.f32 %v1554, %v1555
  %v1557 = vsel %vm1359, %v1339, 0.0
  %v1558 = vadd.f32 %v1556, %v1557
  %v1559 = vsel %vm1359, %v1341, 0.0
  %v1560 = vadd.f32 %v1558, %v1559
  %v1561 = vsel %vm1359, %v1343, 0.0
  %v1562 = vadd.f32 %v1560, %v1561
  %v1563 = vsel %vm1359, %v1345, 0.0
  %v1564 = vadd.f32 %v1562, %v1563
  %v1565 = vsel %vm1359, %v1347, 0.0
  %v1566 = vadd.f32 %v1564, %v1565
  %v1567 = vsel %vm1359, %v1349, 0.0
  %v1568 = vadd.f32 %v1566, %v1567
  %v1569 = vsel %vm1359, %v1351, 0.0
  %v1570 = vadd.f32 %v1568, %v1569
  %v1571 = vsel %vm1359, %v1353, 0.0
  %v1572 = vadd.f32 %v1570, %v1571
  %v1573 = vsel %vm1359, %v1355, 0.0
  %v1574 = vadd.f32 %v1572, %v1573
  %v1575 = vsel %vm1359, %v1357, 0.0
  %v1576 = vadd.f32 %v1574, %v1575
  %v1577 = vsel %vm1359, %v1328, 0.0
  %v1578 = vsel %vm1359, %v1330, 0.0
  %v1579 = vadd.f32 %v1577, %v1578
  %v1580 = vsel %vm1359, %v1332, 0.0
  %v1581 = vadd.f32 %v1579, %v1580
  %v1582 = vsel %vm1359, %v1334, 0.0
  %v1583 = vadd.f32 %v1581, %v1582
  %v1584 = vsel %vm1359, %v1336, 0.0
  %v1585 = vadd.f32 %v1583, %v1584
  %v1586 = vsel %vm1359, %v1338, 0.0
  %v1587 = vadd.f32 %v1585, %v1586
  %v1588 = vsel %vm1359, %v1340, 0.0
  %v1589 = vadd.f32 %v1587, %v1588
  %v1590 = vsel %vm1359, %v1342, 0.0
  %v1591 = vadd.f32 %v1589, %v1590
  %v1592 = vsel %vm1359, %v1344, 0.0
  %v1593 = vadd.f32 %v1591, %v1592
  %v1594 = vsel %vm1359, %v1346, 0.0
  %v1595 = vadd.f32 %v1593, %v1594
  %v1596 = vsel %vm1359, %v1348, 0.0
  %v1597 = vadd.f32 %v1595, %v1596
  %v1598 = vsel %vm1359, %v1350, 0.0
  %v1599 = vadd.f32 %v1597, %v1598
  %v1600 = vsel %vm1359, %v1352, 0.0
  %v1601 = vadd.f32 %v1599, %v1600
  %v1602 = vsel %vm1359, %v1354, 0.0
  %v1603 = vadd.f32 %v1601, %v1602
  %v1604 = vsel %vm1359, %v1356, 0.0
  %v1605 = vadd.f32 %v1603, %v1604
  %v1606 = vsel %vm1359, %v1358, 0.0
  %v1607 = vadd.f32 %v1605, %v1606
  %v1608 = vmul.f32 %v1390, 0.0625
  %v1609 = vmul.f32 %v1421, 0.0625
  %v1610 = vmul.f32 %v1452, 0.0625
  %v1611 = vmul.f32 %v1483, 0.0625
  %v1612 = vmul.f32 %v1514, 0.0625
  %v1613 = vmul.f32 %v1545, 0.0625
  %v1614 = vmul.f32 %v1576, 0.0625
  %v1615 = vmul.f32 %v1607, 0.0625
  %v1616 = vld [vmem:[%s4] sm:$0xff]
  %v1617 = vld [vmem:[%s4 + $0x8] sm:$0xff]
  %v1618 = vld [vmem:[%s4 + $0x10] sm:$0xff]
  %v1619 = vld [vmem:[%s4 + $0x18] sm:$0xff]
  %v1620 = vld [vmem:[%s5] sm:$0x1]
  %v1621 = vpack.c.bf16 %v1609, %v1608
  %v1622 = vpack.c.bf16 %v1611, %v1610
  %v1623 = vpack.c.bf16 %v1617, %v1616
  %v1624 = vpack.c.bf16 %v1619, %v1618
  %v1626 = vlaneseq
  %v1627 = vshrl.u32 %v1626, 7
  %v1628 = vsub.s32 0, %v1627
  %v1629 = vrot.slane %v1620, %v1628
  %v1632 = vsel %vm1359, %v1621, 0
  %v1635 = vsel %vm1359, %v1622, 0
  %1637 = vmatprep.subr.bf16.mxu0 0
  %1638 = vmatpush1.bf16.msra.mxu0 0
  %1639 = vmatprep.subr.bf16.mxu0 0
  %1640 = vmatpush1.bf16.msra.mxu0 0
  %1641 = vmatprep.subr.bf16.mxu0 0
  %1642 = vmatpush1.bf16.msra.mxu0 0
  %1643 = vmatprep.subr.bf16.mxu0 0
  %1644 = vmatpush1.bf16.msra.mxu0 0
  %1645 = vmatprep.subr.bf16.mxu0 0
  %1646 = vmatpush1.bf16.msra.mxu0 0
  %1647 = vmatprep.subr.bf16.mxu0 0
  %1648 = vmatpush1.bf16.msra.mxu0 0
  %1649 = vmatprep.subr.bf16.mxu0 0
  %1650 = vmatpush1.bf16.msra.mxu0 %v1624
  %1651 = vmatprep.subr.bf16.mxu0 0
  %1652 = vmatpush1.bf16.msra.mxu0 %v1623
  %1653 = vmatprep.subr.bf16.mxu0 0
  %1654 = vmatpush2.bf16.msra.mxu0 0
  %1655 = vmatprep.subr.bf16.mxu0 0
  %1656 = vmatpush2.bf16.msra.mxu0 0
  %1657 = vmatprep.subr.bf16.mxu0 0
  %1658 = vmatpush2.bf16.msra.mxu0 0
  %1659 = vmatprep.subr.bf16.mxu0 0
  %1660 = vmatpush2.bf16.msra.mxu0 0
  %1661 = vmatprep.subr.bf16.mxu0 0
  %1662 = vmatpush2.bf16.msra.mxu0 0
  %1663 = vmatprep.subr.bf16.mxu0 0
  %1664 = vmatpush2.bf16.msra.mxu0 0
  %1665 = vmatprep.subr.bf16.mxu0 0
  %1666 = vmatpush2.bf16.msra.mxu0 0
  %1667 = vmatprep.subr.bf16.mxu0 0
  %1668 = vmatpush2.bf16.msra.mxu0 0
  %1669 = vmatprep.mubr.bf16.mxu0 0
  %1670 = vmatmul.mubr.bf16.gmra.mxu0 %v1632
  %v1671 = vpop.f32.mrf.mxu0
  %v1672 = vadd.f32 %v1629, %v1671
  %v1673 = vpop.f32.mrf.mxu0
  %v1674 = vpop.f32.mrf.mxu0
  %v1675 = vadd.f32 %v1629, %v1674
  %v1676 = vpop.f32.mrf.mxu0
  %1677 = vmatprep.mubr.bf16.mxu0 0
  %1678 = vmatmul.mubr.bf16.gmra.mxu0 %v1635
  %v1679 = vpop.f32.mrf.mxu0
  %v1680 = vadd.f32 %v1629, %v1679
  %v1681 = vpop.f32.mrf.mxu0
  %v1682 = vpop.f32.mrf.mxu0
  %v1683 = vadd.f32 %v1629, %v1682
  %v1684 = vpop.f32.mrf.mxu0
  %1685 = vdwg.mxu0
  %v1686 = vld [vmem:[%s1] sm:$0xff]
  %v1687 = vld [vmem:[%s1 + $0x8] sm:$0xff]
  %v1688 = vld [vmem:[%s1 + $0x10] sm:$0xff]
  %v1689 = vld [vmem:[%s1 + $0x18] sm:$0xff]
  %v1690 = vlaneseq
  %v1691 = vand.u32 %v1690, 127
  %1692 = vset.pattern.permute.xlu0 0
  %1693 = vperm.xlu0 %1692, %v1686
  %v1694 = vpop.permute.xlu0 %1693
  %1695 = vset.pattern.permute.xlu0 0
  %1696 = vperm.xlu0 %1695, %v1687
  %v1697 = vpop.permute.xlu0 %1696
  %1698 = vset.pattern.permute.xlu0 0
  %1699 = vperm.xlu0 %1698, %v1688
  %v1700 = vpop.permute.xlu0 %1699
  %1701 = vset.pattern.permute.xlu0 0
  %1702 = vperm.xlu0 %1701, %v1689
  %v1703 = vpop.permute.xlu0 %1702
  %vm1704 = vcmp.eq.s32.totalorder %v1691, %v1694
  %vm1705 = vcmp.eq.s32.totalorder %v1691, %v1697
  %vm1706 = vcmp.eq.s32.totalorder %v1691, %v1700
  %vm1707 = vcmp.eq.s32.totalorder %v1691, %v1703
  %v1708 = vsel %vm1704, 1, 0
  %v1709 = vsel %vm1705, 1, 0
  %v1710 = vsel %vm1706, 1, 0
  %v1711 = vsel %vm1707, 1, 0
  %v1712 = vcvt.s32.f32 %v1708
  %v1713 = vcvt.s32.f32 %v1709
  %v1714 = vcvt.s32.f32 %v1710
  %v1715 = vcvt.s32.f32 %v1711
  %vm1716 = vcmp.ne.s32.totalorder %v1686, 0
  %vm1717 = vcmp.ne.s32.totalorder %v1687, 0
  %vm1718 = vcmp.ne.s32.totalorder %v1688, 0
  %vm1719 = vcmp.ne.s32.totalorder %v1689, 0
  %v1720 = vsel %vm1716, 1, 0
  %v1721 = vsel %vm1717, 1, 0
  %v1722 = vsel %vm1718, 1, 0
  %v1723 = vsel %vm1719, 1, 0
  %v1724 = vcvt.s32.f32 %v1720
  %v1725 = vcvt.s32.f32 %v1721
  %v1726 = vcvt.s32.f32 %v1722
  %v1727 = vcvt.s32.f32 %v1723
  %vm1728 = vcmask 7168
  %v1729 = vsel %vm1728, %v1724, 0.0
  %v1730 = vsel %vm1728, %v1725, 0.0
  %v1731 = vadd.f32 %v1729, %v1730
  %v1732 = vsel %vm1728, %v1726, 0.0
  %v1733 = vadd.f32 %v1731, %v1732
  %v1734 = vsel %vm1728, %v1727, 0.0
  %v1735 = vadd.f32 %v1733, %v1734
  %1736 = vadd.xlane.f32.xlu0 %v1735
  %v1737 = vpop.xlane.xlu0 %1736
  %v1738 = vrot.slane %v1737, 4
  %v1739 = vadd.f32 %v1737, %v1738
  %v1740 = vrot.slane %v1739, 2
  %v1741 = vadd.f32 %v1739, %v1740
  %v1742 = vrot.slane %v1741, 1
  %v1743 = vadd.f32 %v1741, %v1742
  %s1744 = vtos %v1743
  %s1745 = smax.f32 %s1744, 1.0
  %1746 = vmax.xlane.f32.xlu0 %v1672
  %v1747 = vpop.xlane.xlu0 %1746
  %1748 = vmax.xlane.f32.xlu0 %v1675
  %v1749 = vpop.xlane.xlu0 %1748
  %1750 = vmax.xlane.f32.xlu0 %v1680
  %v1751 = vpop.xlane.xlu0 %1750
  %1752 = vmax.xlane.f32.xlu0 %v1683
  %v1753 = vpop.xlane.xlu0 %1752
  %v1754 = vsub.f32 %v1672, %v1747
  %v1755 = vsub.f32 %v1675, %v1749
  %v1756 = vsub.f32 %v1680, %v1751
  %v1757 = vsub.f32 %v1683, %v1753
  %v1758 = vmul.f32 %v1754, 1.442695
  %v1759 = vpow.pop %v1758
  %v1760 = vmul.f32 %v1755, 1.442695
  %v1761 = vpow.pop %v1760
  %v1762 = vmul.f32 %v1756, 1.442695
  %v1763 = vpow.pop %v1762
  %v1764 = vmul.f32 %v1757, 1.442695
  %v1765 = vpow.pop %v1764
  %1766 = vadd.xlane.f32.xlu0 %v1759
  %v1767 = vpop.xlane.xlu0 %1766
  %1768 = vadd.xlane.f32.xlu0 %v1761
  %v1769 = vpop.xlane.xlu0 %1768
  %1770 = vadd.xlane.f32.xlu0 %v1763
  %v1771 = vpop.xlane.xlu0 %1770
  %1772 = vadd.xlane.f32.xlu0 %v1765
  %v1773 = vpop.xlane.xlu0 %1772
  %v1774 = vrcp.pop %v1767
  %v1775 = vrcp.pop %v1769
  %v1776 = vrcp.pop %v1771
  %v1777 = vrcp.pop %v1773
  %v1778 = vmul.f32 %v1759, %v1774
  %v1779 = vmul.f32 %v1761, %v1775
  %v1780 = vmul.f32 %v1763, %v1776
  %v1781 = vmul.f32 %v1765, %v1777
  %v1782 = vsub.f32 %v1778, %v1712
  %v1783 = vsub.f32 %v1779, %v1713
  %v1784 = vsub.f32 %v1780, %v1714
  %v1785 = vsub.f32 %v1781, %v1715
  %v1786 = vstv %s1745
  %v1787 = vrcp.pop %v1786
  %s1788 = vtos %v1787
  %v1789 = vstv %s1788
  %v1790 = vmul.f32 %v1724, %v1789
  %v1791 = vmul.f32 %v1725, %v1789
  %v1792 = vmul.f32 %v1726, %v1789
  %v1793 = vmul.f32 %v1727, %v1789
  %1795 = vset.pattern.permute.xlu0 0
  %1796 = vperm.xlu0 %1795, %v1790
  %v1797 = vpop.permute.xlu0 %1796
  %1800 = vset.pattern.permute.xlu0 0
  %1801 = vperm.xlu0 %1800, %v1791
  %v1802 = vpop.permute.xlu0 %1801
  %1805 = vset.pattern.permute.xlu0 0
  %1806 = vperm.xlu0 %1805, %v1792
  %v1807 = vpop.permute.xlu0 %1806
  %1810 = vset.pattern.permute.xlu0 0
  %1811 = vperm.xlu0 %1810, %v1793
  %v1812 = vpop.permute.xlu0 %1811
  %v1814 = vmul.f32 %v1782, %v1797
  %v1815 = vmul.f32 %v1783, %v1802
  %v1816 = vmul.f32 %v1784, %v1807
  %v1817 = vmul.f32 %v1785, %v1812
  %1818 = vxpose.xlu0.b32.start [1/16] %v1608, 128
  %1819 = vxpose.xlu0.b32.cont [2/16] %v1609, 128
  %1820 = vxpose.xlu0.b32.cont [3/16] %v1610, 128
  %1821 = vxpose.xlu0.b32.cont [4/16] %v1611, 128
  %1822 = vxpose.xlu0.b32.cont [5/16] 0.0, 128
  %1823 = vxpose.xlu0.b32.cont [6/16] 0.0, 128
  %1824 = vxpose.xlu0.b32.cont [7/16] 0.0, 128
  %1825 = vxpose.xlu0.b32.cont [8/16] 0.0, 128
  %1826 = vxpose.xlu0.b32.cont [9/16] 0.0, 128
  %1827 = vxpose.xlu0.b32.cont [10/16] 0.0, 128
  %1828 = vxpose.xlu0.b32.cont [11/16] 0.0, 128
  %1829 = vxpose.xlu0.b32.cont [12/16] 0.0, 128
  %1830 = vxpose.xlu0.b32.cont [13/16] 0.0, 128
  %1831 = vxpose.xlu0.b32.cont [14/16] 0.0, 128
  %1832 = vxpose.xlu0.b32.cont [15/16] 0.0, 128
  %1833 = vxpose.xlu0.b32.end [16/16] 0.0, 128
  %v1834 = vpop.trf.xlu0
  %v1835 = vpop.trf.xlu0
  %v1836 = vpop.trf.xlu0
  %v1837 = vpop.trf.xlu0
  %v1838 = vpop.trf.xlu0
  %v1839 = vpop.trf.xlu0
  %v1840 = vpop.trf.xlu0
  %v1841 = vpop.trf.xlu0
  %v1842 = vpop.trf.xlu0
  %v1843 = vpop.trf.xlu0
  %v1844 = vpop.trf.xlu0
  %v1845 = vpop.trf.xlu0
  %v1846 = vpop.trf.xlu0
  %v1847 = vpop.trf.xlu0
  %v1848 = vpop.trf.xlu0
  %v1849 = vpop.trf.xlu0
  %v1851 = vsel %vm1359, %v1834, 0
  %v1854 = vsel %vm1359, %v1835, 0
  %v1857 = vsel %vm1359, %v1836, 0
  %v1860 = vsel %vm1359, %v1837, 0
  %1862 = vmatprep.subr.mxu0 0.0
  %1863 = vmatpush1.msra.mxu0 0.0
  %1864 = vmatprep.subr.mxu0 0.0
  %1865 = vmatpush1.msra.mxu0 0.0
  %1866 = vmatprep.subr.mxu0 0.0
  %1867 = vmatpush1.msra.mxu0 0.0
  %1868 = vmatprep.subr.mxu0 0.0
  %1869 = vmatpush1.msra.mxu0 0.0
  %1870 = vmatprep.subr.mxu0 0.0
  %1871 = vmatpush1.msra.mxu0 0.0
  %1872 = vmatprep.subr.mxu0 0.0
  %1873 = vmatpush1.msra.mxu0 0.0
  %1874 = vmatprep.subr.mxu0 0.0
  %1875 = vmatpush1.msra.mxu0 0.0
  %1876 = vmatprep.subr.mxu0 0.0
  %1877 = vmatpush1.msra.mxu0 0.0
  %1878 = vmatprep.subr.mxu0 0.0
  %1879 = vmatpush1.msra.mxu0 0.0
  %1880 = vmatprep.subr.mxu0 0.0
  %1881 = vmatpush1.msra.mxu0 0.0
  %1882 = vmatprep.subr.mxu0 0.0
  %1883 = vmatpush1.msra.mxu0 0.0
  %1884 = vmatprep.subr.mxu0 0.0
  %1885 = vmatpush1.msra.mxu0 0.0
  %1886 = vmatprep.subr.mxu0 0.0
  %1887 = vmatpush1.msra.mxu0 %v1817
  %1888 = vmatprep.subr.mxu0 0.0
  %1889 = vmatpush1.msra.mxu0 %v1816
  %1890 = vmatprep.subr.mxu0 0.0
  %1891 = vmatpush1.msra.mxu0 %v1815
  %1892 = vmatprep.subr.mxu0 0.0
  %1893 = vmatpush1.msra.mxu0 %v1814
  %1894 = vmatprep.subr.mxu0 0.0
  %1895 = vmatpush2.msra.mxu0 0.0
  %1896 = vmatprep.subr.mxu0 0.0
  %1897 = vmatpush2.msra.mxu0 0.0
  %1898 = vmatprep.subr.mxu0 0.0
  %1899 = vmatpush2.msra.mxu0 0.0
  %1900 = vmatprep.subr.mxu0 0.0
  %1901 = vmatpush2.msra.mxu0 0.0
  %1902 = vmatprep.subr.mxu0 0.0
  %1903 = vmatpush2.msra.mxu0 0.0
  %1904 = vmatprep.subr.mxu0 0.0
  %1905 = vmatpush2.msra.mxu0 0.0
  %1906 = vmatprep.subr.mxu0 0.0
  %1907 = vmatpush2.msra.mxu0 0.0
  %1908 = vmatprep.subr.mxu0 0.0
  %1909 = vmatpush2.msra.mxu0 0.0
  %1910 = vmatprep.subr.mxu0 0.0
  %1911 = vmatpush2.msra.mxu0 0.0
  %1912 = vmatprep.subr.mxu0 0.0
  %1913 = vmatpush2.msra.mxu0 0.0
  %1914 = vmatprep.subr.mxu0 0.0
  %1915 = vmatpush2.msra.mxu0 0.0
  %1916 = vmatprep.subr.mxu0 0.0
  %1917 = vmatpush2.msra.mxu0 0.0
  %1918 = vmatprep.subr.mxu0 0.0
  %1919 = vmatpush2.msra.mxu0 0.0
  %1920 = vmatprep.subr.mxu0 0.0
  %1921 = vmatpush2.msra.mxu0 0.0
  %1922 = vmatprep.subr.mxu0 0.0
  %1923 = vmatpush2.msra.mxu0 0.0
  %1924 = vmatprep.subr.mxu0 0.0
  %1925 = vmatpush2.msra.mxu0 0.0
  %1926 = vmatprep.mubr.f32.mxu0 0.0
  %1927 = vmatmul.mubr.f32.gmra.mxu0 %v1851
  %v1928 = vpop.f32.mrf.mxu0
  %v1929 = vadd.f32 0.0, %v1928
  %v1930 = vpop.f32.mrf.mxu0
  %1931 = vmatprep.mubr.f32.mxu0 0.0
  %1932 = vmatmul.mubr.f32.gmra.mxu0 %v1854
  %v1933 = vpop.f32.mrf.mxu0
  %v1934 = vadd.f32 0.0, %v1933
  %v1935 = vpop.f32.mrf.mxu0
  %1936 = vmatprep.mubr.f32.mxu0 0.0
  %1937 = vmatmul.mubr.f32.gmra.mxu0 %v1857
  %v1938 = vpop.f32.mrf.mxu0
  %v1939 = vadd.f32 0.0, %v1938
  %v1940 = vpop.f32.mrf.mxu0
  %1941 = vmatprep.mubr.f32.mxu0 0.0
  %1942 = vmatmul.mubr.f32.gmra.mxu0 %v1860
  %v1943 = vpop.f32.mrf.mxu0
  %v1944 = vadd.f32 0.0, %v1943
  %v1945 = vpop.f32.mrf.mxu0
  %1946 = vdwg.mxu0
  %v1947 = vadd.f32 %v1814, %v1815
  %v1948 = vadd.f32 %v1947, %v1816
  %v1949 = vadd.f32 %v1948, %v1817
  %v1950 = vrot.slane %v1949, 4
  %v1951 = vadd.f32 %v1949, %v1950
  %v1952 = vrot.slane %v1951, 2
  %v1953 = vadd.f32 %v1951, %v1952
  %v1954 = vrot.slane %v1953, 1
  %v1955 = vadd.f32 %v1953, %v1954
  %v1956 = vmul.f32 %v1929, 0.001
  %v1957 = vmul.f32 %v1934, 0.001
  %v1958 = vmul.f32 %v1939, 0.001
  %v1959 = vmul.f32 %v1944, 0.001
  %v1960 = vsub.f32 %v1616, %v1956
  %v1961 = vsub.f32 %v1617, %v1957
  %v1962 = vsub.f32 %v1618, %v1958
  %v1963 = vsub.f32 %v1619, %v1959
  %v1964 = vmul.f32 %v1955, 0.001
  %v1965 = vsub.f32 %v1620, %v1964
  %v1966 = vpack.c.bf16 %v1613, %v1612
  %v1967 = vpack.c.bf16 %v1615, %v1614
  %v1968 = vpack.c.bf16 %v1961, %v1960
  %v1969 = vpack.c.bf16 %v1963, %v1962
  %v1971 = vlaneseq
  %v1972 = vshrl.u32 %v1971, 7
  %v1973 = vsub.s32 0, %v1972
  %v1974 = vrot.slane %v1965, %v1973
  %v1977 = vsel %vm1359, %v1966, 0
  %v1980 = vsel %vm1359, %v1967, 0
  %1982 = vmatprep.subr.bf16.mxu0 0
  %1983 = vmatpush1.bf16.msra.mxu0 0
  %1984 = vmatprep.subr.bf16.mxu0 0
  %1985 = vmatpush1.bf16.msra.mxu0 0
  %1986 = vmatprep.subr.bf16.mxu0 0
  %1987 = vmatpush1.bf16.msra.mxu0 0
  %1988 = vmatprep.subr.bf16.mxu0 0
  %1989 = vmatpush1.bf16.msra.mxu0 0
  %1990 = vmatprep.subr.bf16.mxu0 0
  %1991 = vmatpush1.bf16.msra.mxu0 0
  %1992 = vmatprep.subr.bf16.mxu0 0
  %1993 = vmatpush1.bf16.msra.mxu0 0
  %1994 = vmatprep.subr.bf16.mxu0 0
  %1995 = vmatpush1.bf16.msra.mxu0 %v1969
  %1996 = vmatprep.subr.bf16.mxu0 0
  %1997 = vmatpush1.bf16.msra.mxu0 %v1968
  %1998 = vmatprep.subr.bf16.mxu0 0
  %1999 = vmatpush2.bf16.msra.mxu0 0
  %2000 = vmatprep.subr.bf16.mxu0 0
  %2001 = vmatpush2.bf16.msra.mxu0 0
  %2002 = vmatprep.subr.bf16.mxu0 0
  %2003 = vmatpush2.bf16.msra.mxu0 0
  %2004 = vmatprep.subr.bf16.mxu0 0
  %2005 = vmatpush2.bf16.msra.mxu0 0
  %2006 = vmatprep.subr.bf16.mxu0 0
  %2007 = vmatpush2.bf16.msra.mxu0 0
  %2008 = vmatprep.subr.bf16.mxu0 0
  %2009 = vmatpush2.bf16.msra.mxu0 0
  %2010 = vmatprep.subr.bf16.mxu0 0
  %2011 = vmatpush2.bf16.msra.mxu0 0
  %2012 = vmatprep.subr.bf16.mxu0 0
  %2013 = vmatpush2.bf16.msra.mxu0 0
  %2014 = vmatprep.mubr.bf16.mxu0 0
  %2015 = vmatmul.mubr.bf16.gmra.mxu0 %v1977
  %v2016 = vpop.f32.mrf.mxu0
  %v2017 = vadd.f32 %v1974, %v2016
  %v2018 = vpop.f32.mrf.mxu0
  %v2019 = vpop.f32.mrf.mxu0
  %v2020 = vadd.f32 %v1974, %v2019
  %v2021 = vpop.f32.mrf.mxu0
  %2022 = vmatprep.mubr.bf16.mxu0 0
  %2023 = vmatmul.mubr.bf16.gmra.mxu0 %v1980
  %v2024 = vpop.f32.mrf.mxu0
  %v2025 = vadd.f32 %v1974, %v2024
  %v2026 = vpop.f32.mrf.mxu0
  %v2027 = vpop.f32.mrf.mxu0
  %v2028 = vadd.f32 %v1974, %v2027
  %v2029 = vpop.f32.mrf.mxu0
  %2030 = vdwg.mxu0
  %2031 = vst [vmem:[%s6] sm:$0xff] %v2017
  %2032 = vst [vmem:[%s6 + $0x8] sm:$0xff] %v2020
  %2033 = vst [vmem:[%s6 + $0x10] sm:$0xff] %v2025
  %2034 = vst [vmem:[%s6 + $0x18] sm:$0xff] %v2028
  // Predicated region
  $region26: #{maml_htr_forward.1} parent=0 // pred_check
    _
  $region27: #{maml_htr_forward.1} parent=0 // pred_check_branch
    %2036 = sbr.rel (0) target = $region29
  $region28: #{maml_htr_forward.1} parent=0 // pred_region
    _
  $region29: #{maml_htr_forward.1} parent=0 // pred_fallthru
    _
  // Predicated region
  $region30: #{maml_htr_forward.1} parent=0 // pred_check
    _
  $region31: #{maml_htr_forward.1} parent=0 // pred_check_branch
    %2038 = sbr.rel (0) target = $region33
  $region32: #{maml_htr_forward.1} parent=0 // pred_region
    _
  $region33: #{maml_htr_forward.1} parent=0 // pred_fallthru
    _

</llo_original>
